<compile_context>
chip_gen: v7x
topology: tpu7x:2x2x1
jax: 0.10.0
libtpu: 0.0.40
codegen_flags: <defaults>
</compile_context>

<pallas_src>
import functools

import jax
import jax.numpy as jnp
from jax.experimental import pallas as pl
from jax.experimental.pallas import tpu as pltpu

LN_EPS = 1e-5


def _silu(x):
    return x * jax.nn.sigmoid(x)


def _layernorm(x, gamma, beta):
    mu = jnp.mean(x, axis=-1, keepdims=True)
    var = jnp.mean((x - mu) ** 2, axis=-1, keepdims=True)
    xn = (x - mu) * jax.lax.rsqrt(var + LN_EPS)
    return xn * gamma + beta


def _mlp_resblock_kernel(use_context, *refs):
    if use_context:
        (x_ref, emb_ref, ctx_ref,
         g1_ref, b1_ref, wh_ref, bh_ref,
         g2_ref, b2_ref, wout_ref, bout_ref,
         o_ref) = refs
    else:
        (x_ref, emb_ref,
         g1_ref, b1_ref, wh_ref, bh_ref,
         g2_ref, b2_ref, wout_ref, bout_ref,
         o_ref) = refs

    # --- in_layers pre-activation (f32 elementwise): LayerNorm -> SiLU ---
    a_x = _silu(_layernorm(x_ref[...].astype(jnp.float32), g1_ref[...], b1_ref[...]))
    a_e = _silu(emb_ref[...].astype(jnp.float32))
    parts = [a_x.astype(jnp.bfloat16), a_e.astype(jnp.bfloat16)]
    if use_context:
        parts.append(_silu(ctx_ref[...].astype(jnp.float32)).astype(jnp.bfloat16))

    # --- fused K-concatenated GEMM: one MXU pass instead of 2-3 small-K passes ---
    # bf16 operands, f32 accumulation; bias is pre-summed (b_in + b_emb [+ b_ctx]).
    a = jnp.concatenate(parts, axis=-1)
    h = jnp.dot(a, wh_ref[...], preferred_element_type=jnp.float32) + bh_ref[...]

    # --- out_layers: LayerNorm -> SiLU -> Dropout(identity in eval) -> Linear ---
    h = _silu(_layernorm(h, g2_ref[...], b2_ref[...]))
    h = jnp.dot(h.astype(jnp.bfloat16), wout_ref[...],
                preferred_element_type=jnp.float32) + bout_ref[...]

    # --- residual: re-read x (cheap vld) rather than holding it live across matmuls ---
    o_ref[...] = (x_ref[...].astype(jnp.float32) + h).astype(o_ref.dtype)


def _default_batch_tile(B):
    # Multiple-of-8 tile, preferring >= 4 grid steps (pipelining + both v7x TCs busy).
    for t in (1024, 512, 256, 128, 64, 32, 16, 8):
        if B % t == 0 and B // t >= 4:
            return t
    for t in (1024, 512, 256, 128, 64, 32, 16, 8):
        if B % t == 0 and B // t >= 2:
            return t
    return B


def _vmem_limit_bytes(tb, C, E, Ctx, M, param_arrays):
    param_bytes = sum(int(p.size) * p.dtype.itemsize for p in param_arrays)
    # Double-buffered in/out row tiles + f32 intermediates for one step.
    act_bytes = 4 * tb * (2 * (C + E + Ctx) + 2 * C + (C + E + Ctx) + 2 * M)
    budget = 2 * (param_bytes + act_bytes) + (8 << 20)  # generous headroom
    return int(min(budget, 64 << 20))                   # stay within v7x per-TC VMEM


def mlp_resblock(x, emb, context, params, *, use_context=False, batch_tile=None):
    """Run the MlpResBlock forward with a single Pallas kernel, tiled over batch."""
    B, C = x.shape
    E = emb.shape[1]
    Ctx = context.shape[1] if use_context else 0
    M = params["w_in"].shape[1]

    tb = _default_batch_tile(B) if batch_tile is None else batch_tile
    assert B % tb == 0, "batch must be divisible by batch_tile"

    # --- parameter prep (once, in XLA, outside the kernel) ---
    # Fuse the small-K GEMMs: stack weights along K, pre-sum the biases.
    w_parts = [params["w_in"], params["w_emb"]]
    b_h = params["b_in"] + params["b_emb"]
    if use_context:
        w_parts.append(params["w_ctx"])
        b_h = b_h + params["b_ctx"]
    w_h = jnp.concatenate(w_parts, axis=0).astype(jnp.bfloat16)   # (C+E[+Ctx], M)
    w_out = params["w_out"].astype(jnp.bfloat16)                  # (M, C)

    param_arrays = [
        params["g1"], params["b1"], w_h, b_h.astype(jnp.float32),
        params["g2"], params["b2"], w_out, params["b_out"],
    ]

    def row_spec(cols):
        return pl.BlockSpec((tb, cols), lambda i: (i, 0))

    def param_spec(arr):
        # Grid-invariant block: single-buffer it instead of the default double buffer.
        return pl.BlockSpec(arr.shape, lambda i: (0,) * arr.ndim,
                            pipeline_mode=pl.Buffered(1))

    inputs = [x, emb] + ([context] if use_context else []) + param_arrays
    in_specs = [row_spec(C), row_spec(E)]
    if use_context:
        in_specs.append(row_spec(Ctx))
    in_specs += [param_spec(p) for p in param_arrays]

    kernel = functools.partial(_mlp_resblock_kernel, use_context)

    return pl.pallas_call(
        kernel,
        out_shape=jax.ShapeDtypeStruct((B, C), x.dtype),
        grid_spec=pltpu.PrefetchScalarGridSpec(
            num_scalar_prefetch=0,
            grid=(B // tb,),
            in_specs=in_specs,
            out_specs=row_spec(C),
        ),
        compiler_params=pltpu.CompilerParams(
            dimension_semantics=("parallel",),
            vmem_limit_bytes=_vmem_limit_bytes(tb, C, E, Ctx, M, param_arrays),
        ),
    )(*inputs)


def mlp_resblock_ref(x, emb, context, params, *, use_context=False):
    """Pure-JAX reference of the PyTorch forward (eval mode), using the same numeric
    recipe as the kernel (bf16 MXU operands, f32 accumulation / elementwise math)."""

    def mm(a, w):
        return jnp.dot(a.astype(jnp.bfloat16), w.astype(jnp.bfloat16),
                       preferred_element_type=jnp.float32)

    xf = x.astype(jnp.float32)
    h = mm(_silu(_layernorm(xf, params["g1"], params["b1"])), params["w_in"]) + params["b_in"]
    e = mm(_silu(emb.astype(jnp.float32)), params["w_emb"]) + params["b_emb"]
    h = h + e
    if use_context:
        c = mm(_silu(context.astype(jnp.float32)), params["w_ctx"]) + params["b_ctx"]
        h = h + c
    h = _silu(_layernorm(h, params["g2"], params["b2"]))
    h = mm(h, params["w_out"]) + params["b_out"]
    return (xf + h).astype(x.dtype)


def make_params(key, channels, mid_channels, emb_channels, context_channels):
    ks = jax.random.split(key, 10)
    scale = 0.05
    return {
        # in_layers
        "g1": jnp.ones((1, channels), jnp.float32),
        "b1": jnp.zeros((1, channels), jnp.float32),
        "w_in": scale * jax.random.normal(ks[0], (channels, mid_channels), jnp.float32),
        "b_in": scale * jax.random.normal(ks[1], (1, mid_channels), jnp.float32),
        # emb_layers
        "w_emb": scale * jax.random.normal(ks[2], (emb_channels, mid_channels), jnp.float32),
        "b_emb": scale * jax.random.normal(ks[3], (1, mid_channels), jnp.float32),
        # context_layers (only used if use_context)
        "w_ctx": scale * jax.random.normal(ks[4], (context_channels, mid_channels), jnp.float32),
        "b_ctx": scale * jax.random.normal(ks[5], (1, mid_channels), jnp.float32),
        # out_layers (zero_module in the original init; non-zero here to exercise compute)
        "g2": jnp.ones((1, mid_channels), jnp.float32),
        "b2": jnp.zeros((1, mid_channels), jnp.float32),
        "w_out": scale * jax.random.normal(ks[6], (mid_channels, channels), jnp.float32),
        "b_out": scale * jax.random.normal(ks[7], (1, channels), jnp.float32),
    }


if __name__ == "__main__":
    # 128-aligned feature dims (lane-dense stores / full MXU tiles); batch tiled into
    # 4 grid steps of 64 rows by default.
    B = 256
    channels = 128
    mid_channels = 256
    emb_channels = 128
    context_channels = 256

    key = jax.random.PRNGKey(0)
    kx, ke, kc, kp = jax.random.split(key, 4)
    x = jax.random.normal(kx, (B, channels), jnp.float32)
    emb = jax.random.normal(ke, (B, emb_channels), jnp.float32)
    context = jax.random.normal(kc, (B, context_channels), jnp.float32)
    params = make_params(kp, channels, mid_channels, emb_channels, context_channels)

    ok = True
    for use_context in (False, True):
        out = mlp_resblock(x, emb, context, params, use_context=use_context)
        out = jax.block_until_ready(out)
        ref = mlp_resblock_ref(x, emb, context, params, use_context=use_context)
        err = float(jnp.max(jnp.abs(out - ref)))
        if err > 1e-3:
            ok = False
            print(f"mismatch (use_context={use_context}): max abs err = {err}")

    if ok:
        print("KERNEL_OK")
</pallas_src>

<mosaic_0001>
module attributes {stable_mosaic.version = 11 : i64} {
  func.func @_mlp_resblock_kernel(%arg0: i32, %arg1: memref<64x128xf32, #tpu.memory_space<vmem>>, %arg2: memref<64x128xf32, #tpu.memory_space<vmem>>, %arg3: memref<1x128xf32, #tpu.memory_space<vmem>>, %arg4: memref<1x128xf32, #tpu.memory_space<vmem>>, %arg5: memref<256x256xbf16, #tpu.memory_space<vmem>>, %arg6: memref<1x256xf32, #tpu.memory_space<vmem>>, %arg7: memref<1x256xf32, #tpu.memory_space<vmem>>, %arg8: memref<1x256xf32, #tpu.memory_space<vmem>>, %arg9: memref<256x128xbf16, #tpu.memory_space<vmem>>, %arg10: memref<1x128xf32, #tpu.memory_space<vmem>>, %arg11: memref<64x128xf32, #tpu.memory_space<vmem>>) attributes {dimension_semantics = [#tpu.dimension_semantics<parallel>], iteration_bounds = array<i64: 4>, scalar_prefetch = 0 : i64, scratch_operands = 0 : i64, tpu.core_type = #tpu.core_type<tc>, window_params = [{transform_indices = @transform_0, window_bounds = array<i64: 64, 128>}, {transform_indices = @transform_1, window_bounds = array<i64: 64, 128>}, {pipeline_mode = #tpu.pipeline_mode<synchronous>, transform_indices = @transform_2, window_bounds = array<i64: 1, 128>}, {pipeline_mode = #tpu.pipeline_mode<synchronous>, transform_indices = @transform_3, window_bounds = array<i64: 1, 128>}, {pipeline_mode = #tpu.pipeline_mode<synchronous>, transform_indices = @transform_4, window_bounds = array<i64: 256, 256>}, {pipeline_mode = #tpu.pipeline_mode<synchronous>, transform_indices = @transform_5, window_bounds = array<i64: 1, 256>}, {pipeline_mode = #tpu.pipeline_mode<synchronous>, transform_indices = @transform_6, window_bounds = array<i64: 1, 256>}, {pipeline_mode = #tpu.pipeline_mode<synchronous>, transform_indices = @transform_7, window_bounds = array<i64: 1, 256>}, {pipeline_mode = #tpu.pipeline_mode<synchronous>, transform_indices = @transform_8, window_bounds = array<i64: 256, 128>}, {pipeline_mode = #tpu.pipeline_mode<synchronous>, transform_indices = @transform_9, window_bounds = array<i64: 1, 128>}, {transform_indices = @transform_10, window_bounds = array<i64: 64, 128>}]} {
    %c0 = arith.constant 0 : index
    %c0_0 = arith.constant 0 : index
    %0 = vector.load %arg1[%c0, %c0_0] : memref<64x128xf32, #tpu.memory_space<vmem>>, vector<64x128xf32>
    %c0_1 = arith.constant 0 : index
    %c0_2 = arith.constant 0 : index
    %1 = vector.load %arg3[%c0_1, %c0_2] : memref<1x128xf32, #tpu.memory_space<vmem>>, vector<1x128xf32>
    %c0_3 = arith.constant 0 : index
    %c0_4 = arith.constant 0 : index
    %2 = vector.load %arg4[%c0_3, %c0_4] : memref<1x128xf32, #tpu.memory_space<vmem>>, vector<1x128xf32>
    %cst = arith.constant dense<0.000000e+00> : vector<64xf32>
    %3 = vector.multi_reduction <add>, %0, %cst [1] : vector<64x128xf32> to vector<64xf32>
    %4 = vector.shape_cast %3 : vector<64xf32> to vector<64x1xf32>
    %cst_5 = arith.constant 1.280000e+02 : f32
    %5 = vector.broadcast %cst_5 : f32 to vector<64x1xf32>
    %6 = arith.divf %4, %5 : vector<64x1xf32>
    %7 = vector.broadcast %6 : vector<64x1xf32> to vector<64x128xf32>
    %8 = arith.subf %0, %7 : vector<64x128xf32>
    %9 = arith.mulf %8, %8 : vector<64x128xf32>
    %cst_6 = arith.constant dense<0.000000e+00> : vector<64xf32>
    %10 = vector.multi_reduction <add>, %9, %cst_6 [1] : vector<64x128xf32> to vector<64xf32>
    %11 = vector.shape_cast %10 : vector<64xf32> to vector<64x1xf32>
    %cst_7 = arith.constant 1.280000e+02 : f32
    %12 = vector.broadcast %cst_7 : f32 to vector<64x1xf32>
    %13 = arith.divf %11, %12 : vector<64x1xf32>
    %14 = vector.broadcast %6 : vector<64x1xf32> to vector<64x128xf32>
    %15 = arith.subf %0, %14 : vector<64x128xf32>
    %cst_8 = arith.constant 9.99999974E-6 : f32
    %16 = vector.broadcast %cst_8 : f32 to vector<64x1xf32>
    %17 = arith.addf %13, %16 : vector<64x1xf32>
    %18 = math.rsqrt %17 : vector<64x1xf32>
    %19 = vector.broadcast %18 : vector<64x1xf32> to vector<64x128xf32>
    %20 = arith.mulf %15, %19 : vector<64x128xf32>
    %21 = vector.broadcast %1 : vector<1x128xf32> to vector<64x128xf32>
    %22 = arith.mulf %20, %21 : vector<64x128xf32>
    %23 = vector.broadcast %2 : vector<1x128xf32> to vector<64x128xf32>
    %24 = arith.addf %22, %23 : vector<64x128xf32>
    %25 = arith.negf %24 : vector<64x128xf32>
    %26 = math.exp %25 : vector<64x128xf32>
    %cst_9 = arith.constant 1.000000e+00 : f32
    %27 = vector.broadcast %cst_9 : f32 to vector<64x128xf32>
    %28 = arith.addf %27, %26 : vector<64x128xf32>
    %29 = arith.divf %27, %28 : vector<64x128xf32>
    %30 = arith.mulf %24, %29 : vector<64x128xf32>
    %c0_10 = arith.constant 0 : index
    %c0_11 = arith.constant 0 : index
    %31 = vector.load %arg2[%c0_10, %c0_11] : memref<64x128xf32, #tpu.memory_space<vmem>>, vector<64x128xf32>
    %32 = arith.negf %31 : vector<64x128xf32>
    %33 = math.exp %32 : vector<64x128xf32>
    %cst_12 = arith.constant 1.000000e+00 : f32
    %34 = vector.broadcast %cst_12 : f32 to vector<64x128xf32>
    %35 = arith.addf %34, %33 : vector<64x128xf32>
    %36 = arith.divf %34, %35 : vector<64x128xf32>
    %37 = arith.mulf %31, %36 : vector<64x128xf32>
    %38 = arith.truncf %30 : vector<64x128xf32> to vector<64x128xbf16>
    %39 = arith.truncf %37 : vector<64x128xf32> to vector<64x128xbf16>
    %40 = tpu.concatenate %38, %39 in 1 : vector<64x128xbf16>, vector<64x128xbf16> -> vector<64x256xbf16>
    %c0_13 = arith.constant 0 : index
    %c0_14 = arith.constant 0 : index
    %41 = vector.load %arg5[%c0_13, %c0_14] : memref<256x256xbf16, #tpu.memory_space<vmem>>, vector<256x256xbf16>
    %cst_15 = arith.constant dense<0.000000e+00> : vector<64x256xf32>
    %42 = tpu.matmul %40, %41, %cst_15 {dimension_numbers = #tpu.dot_dimension_numbers<[1], [0], [0], [1], [0, 0, 1, 1], [], []>} : vector<64x256xbf16>, vector<256x256xbf16>, vector<64x256xf32> -> vector<64x256xf32>
    %c0_16 = arith.constant 0 : index
    %c0_17 = arith.constant 0 : index
    %43 = vector.load %arg6[%c0_16, %c0_17] : memref<1x256xf32, #tpu.memory_space<vmem>>, vector<1x256xf32>
    %44 = vector.broadcast %43 : vector<1x256xf32> to vector<64x256xf32>
    %45 = arith.addf %42, %44 : vector<64x256xf32>
    %c0_18 = arith.constant 0 : index
    %c0_19 = arith.constant 0 : index
    %46 = vector.load %arg7[%c0_18, %c0_19] : memref<1x256xf32, #tpu.memory_space<vmem>>, vector<1x256xf32>
    %c0_20 = arith.constant 0 : index
    %c0_21 = arith.constant 0 : index
    %47 = vector.load %arg8[%c0_20, %c0_21] : memref<1x256xf32, #tpu.memory_space<vmem>>, vector<1x256xf32>
    %cst_22 = arith.constant dense<0.000000e+00> : vector<64xf32>
    %48 = vector.multi_reduction <add>, %45, %cst_22 [1] : vector<64x256xf32> to vector<64xf32>
    %49 = vector.shape_cast %48 : vector<64xf32> to vector<64x1xf32>
    %cst_23 = arith.constant 2.560000e+02 : f32
    %50 = vector.broadcast %cst_23 : f32 to vector<64x1xf32>
    %51 = arith.divf %49, %50 : vector<64x1xf32>
    %52 = vector.broadcast %51 : vector<64x1xf32> to vector<64x256xf32>
    %53 = arith.subf %45, %52 : vector<64x256xf32>
    %54 = arith.mulf %53, %53 : vector<64x256xf32>
    %cst_24 = arith.constant dense<0.000000e+00> : vector<64xf32>
    %55 = vector.multi_reduction <add>, %54, %cst_24 [1] : vector<64x256xf32> to vector<64xf32>
    %56 = vector.shape_cast %55 : vector<64xf32> to vector<64x1xf32>
    %cst_25 = arith.constant 2.560000e+02 : f32
    %57 = vector.broadcast %cst_25 : f32 to vector<64x1xf32>
    %58 = arith.divf %56, %57 : vector<64x1xf32>
    %59 = vector.broadcast %51 : vector<64x1xf32> to vector<64x256xf32>
    %60 = arith.subf %45, %59 : vector<64x256xf32>
    %cst_26 = arith.constant 9.99999974E-6 : f32
    %61 = vector.broadcast %cst_26 : f32 to vector<64x1xf32>
    %62 = arith.addf %58, %61 : vector<64x1xf32>
    %63 = math.rsqrt %62 : vector<64x1xf32>
    %64 = vector.broadcast %63 : vector<64x1xf32> to vector<64x256xf32>
    %65 = arith.mulf %60, %64 : vector<64x256xf32>
    %66 = vector.broadcast %46 : vector<1x256xf32> to vector<64x256xf32>
    %67 = arith.mulf %65, %66 : vector<64x256xf32>
    %68 = vector.broadcast %47 : vector<1x256xf32> to vector<64x256xf32>
    %69 = arith.addf %67, %68 : vector<64x256xf32>
    %70 = arith.negf %69 : vector<64x256xf32>
    %71 = math.exp %70 : vector<64x256xf32>
    %cst_27 = arith.constant 1.000000e+00 : f32
    %72 = vector.broadcast %cst_27 : f32 to vector<64x256xf32>
    %73 = arith.addf %72, %71 : vector<64x256xf32>
    %74 = arith.divf %72, %73 : vector<64x256xf32>
    %75 = arith.mulf %69, %74 : vector<64x256xf32>
    %76 = arith.truncf %75 : vector<64x256xf32> to vector<64x256xbf16>
    %c0_28 = arith.constant 0 : index
    %c0_29 = arith.constant 0 : index
    %77 = vector.load %arg9[%c0_28, %c0_29] : memref<256x128xbf16, #tpu.memory_space<vmem>>, vector<256x128xbf16>
    %cst_30 = arith.constant dense<0.000000e+00> : vector<64x128xf32>
    %78 = tpu.matmul %76, %77, %cst_30 {dimension_numbers = #tpu.dot_dimension_numbers<[1], [0], [0], [1], [0, 0, 1, 1], [], []>} : vector<64x256xbf16>, vector<256x128xbf16>, vector<64x128xf32> -> vector<64x128xf32>
    %c0_31 = arith.constant 0 : index
    %c0_32 = arith.constant 0 : index
    %79 = vector.load %arg10[%c0_31, %c0_32] : memref<1x128xf32, #tpu.memory_space<vmem>>, vector<1x128xf32>
    %80 = vector.broadcast %79 : vector<1x128xf32> to vector<64x128xf32>
    %81 = arith.addf %78, %80 : vector<64x128xf32>
    %c0_33 = arith.constant 0 : index
    %c0_34 = arith.constant 0 : index
    %82 = vector.load %arg1[%c0_33, %c0_34] : memref<64x128xf32, #tpu.memory_space<vmem>>, vector<64x128xf32>
    %83 = arith.addf %82, %81 : vector<64x128xf32>
    %c0_35 = arith.constant 0 : index
    %c0_36 = arith.constant 0 : index
    %84 = vector.load %arg11[%c0_35, %c0_36] : memref<64x128xf32, #tpu.memory_space<vmem>>, vector<64x128xf32>
    tpu.vector_store %arg11[%c0_35, %c0_36], %83 {strides = array<i32>} : memref<64x128xf32, #tpu.memory_space<vmem>>, vector<64x128xf32>,
    return
  }
  func.func @transform_0(%arg0: i32) -> (i32, i32) {
    %c0_i32 = arith.constant 0 : i32
    %c0_i32_0 = arith.constant 0 : i32
    return %arg0, %c0_i32 : i32, i32
  }
  func.func @transform_1(%arg0: i32) -> (i32, i32) {
    %c0_i32 = arith.constant 0 : i32
    %c0_i32_0 = arith.constant 0 : i32
    return %arg0, %c0_i32 : i32, i32
  }
  func.func @transform_2(%arg0: i32) -> (i32, i32) {
    %c0_i32 = arith.constant 0 : i32
    %c0_i32_0 = arith.constant 0 : i32
    %c0_i32_1 = arith.constant 0 : i32
    return %c0_i32, %c0_i32_0 : i32, i32
  }
  func.func @transform_3(%arg0: i32) -> (i32, i32) {
    %c0_i32 = arith.constant 0 : i32
    %c0_i32_0 = arith.constant 0 : i32
    %c0_i32_1 = arith.constant 0 : i32
    return %c0_i32, %c0_i32_0 : i32, i32
  }
  func.func @transform_4(%arg0: i32) -> (i32, i32) {
    %c0_i32 = arith.constant 0 : i32
    %c0_i32_0 = arith.constant 0 : i32
    %c0_i32_1 = arith.constant 0 : i32
    return %c0_i32, %c0_i32_0 : i32, i32
  }
  func.func @transform_5(%arg0: i32) -> (i32, i32) {
    %c0_i32 = arith.constant 0 : i32
    %c0_i32_0 = arith.constant 0 : i32
    %c0_i32_1 = arith.constant 0 : i32
    return %c0_i32, %c0_i32_0 : i32, i32
  }
  func.func @transform_6(%arg0: i32) -> (i32, i32) {
    %c0_i32 = arith.constant 0 : i32
    %c0_i32_0 = arith.constant 0 : i32
    %c0_i32_1 = arith.constant 0 : i32
    return %c0_i32, %c0_i32_0 : i32, i32
  }
  func.func @transform_7(%arg0: i32) -> (i32, i32) {
    %c0_i32 = arith.constant 0 : i32
    %c0_i32_0 = arith.constant 0 : i32
    %c0_i32_1 = arith.constant 0 : i32
    return %c0_i32, %c0_i32_0 : i32, i32
  }
  func.func @transform_8(%arg0: i32) -> (i32, i32) {
    %c0_i32 = arith.constant 0 : i32
    %c0_i32_0 = arith.constant 0 : i32
    %c0_i32_1 = arith.constant 0 : i32
    return %c0_i32, %c0_i32_0 : i32, i32
  }
  func.func @transform_9(%arg0: i32) -> (i32, i32) {
    %c0_i32 = arith.constant 0 : i32
    %c0_i32_0 = arith.constant 0 : i32
    %c0_i32_1 = arith.constant 0 : i32
    return %c0_i32, %c0_i32_0 : i32, i32
  }
  func.func @transform_10(%arg0: i32) -> (i32, i32) {
    %c0_i32 = arith.constant 0 : i32
    %c0_i32_0 = arith.constant 0 : i32
    return %arg0, %c0_i32 : i32, i32
  }
}

</mosaic_0001>

<llo_original>
// kernel: tpu_custom_call.1
$region0: #{tpu_custom_call.1}
  #allocation0 [shape = 'u32[]', space=smem, size = 0x4, offset = 0x4, fixed_abs, tag = 'smem constant byte address 0x4 - core index']
  #allocation1 [shape = 'u32[144,128]{1,0:T(1,128)}', space=vmem, size = 0x12000, scoped, tag = 'internal scratch']
  %s0 = inlined_call_operand.hbm [shape: f32[256,128], index: 0, kind: input, shape index: {}]
  %s1 = inlined_call_operand.hbm [shape: f32[256,128], index: 1, kind: input, shape index: {}]
  %s2 = inlined_call_operand.vmem [shape: f32[1,128], index: 2, kind: input, shape index: {}]
  %s3 = inlined_call_operand.vmem [shape: f32[1,128], index: 3, kind: input, shape index: {}]
  %s4 = inlined_call_operand.hbm [shape: bf16[256,256], index: 4, kind: input, shape index: {}]
  %s5 = inlined_call_operand.vmem [shape: f32[1,256], index: 5, kind: input, shape index: {}]
  %s6 = inlined_call_operand.vmem [shape: f32[1,256], index: 6, kind: input, shape index: {}]
  %s7 = inlined_call_operand.vmem [shape: f32[1,256], index: 7, kind: input, shape index: {}]
  %s8 = inlined_call_operand.hbm [shape: bf16[256,128], index: 8, kind: input, shape index: {}]
  %s9 = inlined_call_operand.vmem [shape: f32[1,128], index: 9, kind: input, shape index: {}]
  %s10 = inlined_call_operand.hbm [shape: f32[256,128], index: 10, kind: output, shape index: {}]
  %s11 = sld [smem:[#allocation0]]
  $region89: #{tpu_custom_call.1} parent=0
    _
  %s13 = ssub.s32 1, %s11
  %s14 = scalar_select 0, %s13, %s11
  $region1: #{tpu_custom_call.1} parent=0
    #allocation2 [shape = 'u8[65536]{0}', space=vmem, size = 0x10000, scoped, tag = 'input window, operand 0']
    #allocation3 [shape = 's32[2]{0}', space=sflag, size = 0x8, scoped, tag = 'scoped memory for tpu_custom_call.1']
    #allocation4 [shape = 's32[2]{0}', space=sflag, size = 0x8, scoped, tag = 'scoped memory for tpu_custom_call.1']
    #allocation5 [shape = 'u8[65536]{0}', space=vmem, size = 0x10000, scoped, tag = 'input window, operand 1']
    #allocation6 [shape = 's32[2]{0}', space=sflag, size = 0x8, scoped, tag = 'scoped memory for tpu_custom_call.1']
    #allocation7 [shape = 'u8[131072]{0}', space=vmem, size = 0x20000, scoped, tag = 'input window, operand 4, single buffered']
    #allocation8 [shape = 'u8[65536]{0}', space=vmem, size = 0x10000, scoped, tag = 'input window, operand 8, single buffered']
    #allocation9 [shape = 's32[1]{0}', space=sflag, size = 0x4, scoped, tag = 'scoped memory for tpu_custom_call.1']
    #allocation10 [shape = 'u8[65536]{0}', space=vmem, size = 0x10000, scoped, tag = 'output window, operand 0']
    %15 = vsyncpa [#allocation3], 0
    %s16 = scalar_lea.sflag [#allocation3], 1
    %17 = vsyncpa %s16, 0
    %18 = vsyncpa [#allocation6], 0
    %s19 = scalar_lea.sflag [#allocation6], 1
    %20 = vsyncpa %s19, 0
    %21 = vsyncpa [#allocation9], 0
    %22 = vsyncpa [#allocation4], 0
    %s23 = scalar_lea.sflag [#allocation4], 1
    %24 = vsyncpa %s23, 0
    loop: start=0, step=1, limit=6
    $region2: #{tpu_custom_call.1} parent=1 // loop_pre_header
      _
    $region3: #{tpu_custom_call.1} parent=1 // loop_header
      %s26 = sphi 0, %s30
      %p27 = scmp.ge.s32.totalorder %s26, 6
      %s36 = sphi 0, %s38
      %s39 = sphi 0, %s36
      %s40 = sphi 0, %s39
      %s56 = sphi 0, %s40
      %s62 = sphi 0, %s64
      %s65 = sphi 0, %s62
      %s66 = sphi 0, %s65
      %s82 = sphi 0, %s66
      %s86 = sphi 0, %s86
      %s88 = sphi 0, %s86
      %s89 = sphi 0, %s88
      %s103 = sphi 0, %s89
      %s107 = sphi 0, %s107
      %s109 = sphi 0, %s107
      %s110 = sphi 0, %s109
      %s124 = sphi 0, %s110
      %s128 = sphi 0, %s128
      %s130 = sphi 0, %s128
      %s131 = sphi 0, %s130
      %s145 = sphi 0, %s131
      %s149 = sphi 0, %s149
      %s151 = sphi 0, %s149
      %s152 = sphi 0, %s151
      %s166 = sphi 0, %s152
      %s170 = sphi 0, %s170
      %s172 = sphi 0, %s170
      %s173 = sphi 0, %s172
      %s187 = sphi 0, %s173
      %s191 = sphi 0, %s191
      %s193 = sphi 0, %s191
      %s194 = sphi 0, %s193
      %s208 = sphi 0, %s194
      %s212 = sphi 0, %s212
      %s214 = sphi 0, %s212
      %s215 = sphi 0, %s214
      %s229 = sphi 0, %s215
      %s233 = sphi 0, %s233
      %s235 = sphi 0, %s233
      %s236 = sphi 0, %s235
      %s250 = sphi 0, %s236
      %s256 = sphi 0, %s258
      %s259 = sphi 0, %s256
      %s260 = sphi 0, %s259
      %s276 = sphi 0, %s260
    $region4: #{tpu_custom_call.1} parent=1 // loop_header_branch
      %29 = sbr.rel (%p27) target = $region8
    $region5: #{tpu_custom_call.1} parent=1 // loop_body
      %s31 = ssub.s32 %s26, 1
      %s32 = ssub.s32 %s26, 2
      %s33 = sadd.s32 %s26, 1
      %s34 = ssub.s32 %s26, %s33
      %p35 = scmp.eq.s32.totalorder %s34, 0
      %s37 = sadd.s32 %s36, 1
      %s38 = scalar_select %p35, %s36, %s37
      %p41 = pneg %p35
      %p42 = scmp.eq.s32.totalorder %s26, 3
      %p43 = por %p41, %p42
      %p44 = scmp.ne.s32.totalorder %s36, %s39
      %p45 = scmp.eq.s32.totalorder %s26, 0
      %p46 = por %p44, %p45
      %p47 = scmp.ne.s32.totalorder %s36, %s39
      %p48 = scmp.eq.s32.totalorder %s31, 3
      %p49 = por %p47, %p48
      %p50 = scmp.ne.s32.totalorder %s39, %s40
      %p51 = scmp.eq.s32.totalorder %s31, 0
      %p52 = por %p50, %p51
      %p53 = scmp.ne.s32.totalorder %s39, %s40
      %p54 = scmp.eq.s32.totalorder %s32, 3
      %p55 = por %p53, %p54
      %p57 = scmp.ne.s32.totalorder %s40, %s56
      %p58 = scmp.eq.s32.totalorder %s32, 0
      %p59 = por %p57, %p58
      %s60 = ssub.s32 %s26, %s33
      %p61 = scmp.eq.s32.totalorder %s60, 0
      %s63 = sadd.s32 %s62, 1
      %s64 = scalar_select %p61, %s62, %s63
      %p67 = pneg %p61
      %p68 = scmp.eq.s32.totalorder %s26, 3
      %p69 = por %p67, %p68
      %p70 = scmp.ne.s32.totalorder %s62, %s65
      %p71 = scmp.eq.s32.totalorder %s26, 0
      %p72 = por %p70, %p71
      %p73 = scmp.ne.s32.totalorder %s62, %s65
      %p74 = scmp.eq.s32.totalorder %s31, 3
      %p75 = por %p73, %p74
      %p76 = scmp.ne.s32.totalorder %s65, %s66
      %p77 = scmp.eq.s32.totalorder %s31, 0
      %p78 = por %p76, %p77
      %p79 = scmp.ne.s32.totalorder %s65, %s66
      %p80 = scmp.eq.s32.totalorder %s32, 3
      %p81 = por %p79, %p80
      %p83 = scmp.ne.s32.totalorder %s66, %s82
      %p84 = scmp.eq.s32.totalorder %s32, 0
      %p85 = por %p83, %p84
      %s87 = sadd.s32 %s86, 1
      %p90 = scmp.eq.s32.totalorder %s26, 3
      %p91 = scmp.ne.s32.totalorder %s86, %s88
      %p92 = scmp.eq.s32.totalorder %s26, 0
      %p93 = por %p91, %p92
      %p94 = scmp.ne.s32.totalorder %s86, %s88
      %p95 = scmp.eq.s32.totalorder %s31, 3
      %p96 = por %p94, %p95
      %p97 = scmp.ne.s32.totalorder %s88, %s89
      %p98 = scmp.eq.s32.totalorder %s31, 0
      %p99 = por %p97, %p98
      %p100 = scmp.ne.s32.totalorder %s88, %s89
      %p101 = scmp.eq.s32.totalorder %s32, 3
      %p102 = por %p100, %p101
      %p104 = scmp.ne.s32.totalorder %s89, %s103
      %p105 = scmp.eq.s32.totalorder %s32, 0
      %p106 = por %p104, %p105
      %s108 = sadd.s32 %s107, 1
      %p111 = scmp.eq.s32.totalorder %s26, 3
      %p112 = scmp.ne.s32.totalorder %s107, %s109
      %p113 = scmp.eq.s32.totalorder %s26, 0
      %p114 = por %p112, %p113
      %p115 = scmp.ne.s32.totalorder %s107, %s109
      %p116 = scmp.eq.s32.totalorder %s31, 3
      %p117 = por %p115, %p116
      %p118 = scmp.ne.s32.totalorder %s109, %s110
      %p119 = scmp.eq.s32.totalorder %s31, 0
      %p120 = por %p118, %p119
      %p121 = scmp.ne.s32.totalorder %s109, %s110
      %p122 = scmp.eq.s32.totalorder %s32, 3
      %p123 = por %p121, %p122
      %p125 = scmp.ne.s32.totalorder %s110, %s124
      %p126 = scmp.eq.s32.totalorder %s32, 0
      %p127 = por %p125, %p126
      %s129 = sadd.s32 %s128, 1
      %p132 = scmp.eq.s32.totalorder %s26, 3
      %p133 = scmp.ne.s32.totalorder %s128, %s130
      %p134 = scmp.eq.s32.totalorder %s26, 0
      %p135 = por %p133, %p134
      %p136 = scmp.ne.s32.totalorder %s128, %s130
      %p137 = scmp.eq.s32.totalorder %s31, 3
      %p138 = por %p136, %p137
      %p139 = scmp.ne.s32.totalorder %s130, %s131
      %p140 = scmp.eq.s32.totalorder %s31, 0
      %p141 = por %p139, %p140
      %p142 = scmp.ne.s32.totalorder %s130, %s131
      %p143 = scmp.eq.s32.totalorder %s32, 3
      %p144 = por %p142, %p143
      %p146 = scmp.ne.s32.totalorder %s131, %s145
      %p147 = scmp.eq.s32.totalorder %s32, 0
      %p148 = por %p146, %p147
      %s150 = sadd.s32 %s149, 1
      %p153 = scmp.eq.s32.totalorder %s26, 3
      %p154 = scmp.ne.s32.totalorder %s149, %s151
      %p155 = scmp.eq.s32.totalorder %s26, 0
      %p156 = por %p154, %p155
      %p157 = scmp.ne.s32.totalorder %s149, %s151
      %p158 = scmp.eq.s32.totalorder %s31, 3
      %p159 = por %p157, %p158
      %p160 = scmp.ne.s32.totalorder %s151, %s152
      %p161 = scmp.eq.s32.totalorder %s31, 0
      %p162 = por %p160, %p161
      %p163 = scmp.ne.s32.totalorder %s151, %s152
      %p164 = scmp.eq.s32.totalorder %s32, 3
      %p165 = por %p163, %p164
      %p167 = scmp.ne.s32.totalorder %s152, %s166
      %p168 = scmp.eq.s32.totalorder %s32, 0
      %p169 = por %p167, %p168
      %s171 = sadd.s32 %s170, 1
      %p174 = scmp.eq.s32.totalorder %s26, 3
      %p175 = scmp.ne.s32.totalorder %s170, %s172
      %p176 = scmp.eq.s32.totalorder %s26, 0
      %p177 = por %p175, %p176
      %p178 = scmp.ne.s32.totalorder %s170, %s172
      %p179 = scmp.eq.s32.totalorder %s31, 3
      %p180 = por %p178, %p179
      %p181 = scmp.ne.s32.totalorder %s172, %s173
      %p182 = scmp.eq.s32.totalorder %s31, 0
      %p183 = por %p181, %p182
      %p184 = scmp.ne.s32.totalorder %s172, %s173
      %p185 = scmp.eq.s32.totalorder %s32, 3
      %p186 = por %p184, %p185
      %p188 = scmp.ne.s32.totalorder %s173, %s187
      %p189 = scmp.eq.s32.totalorder %s32, 0
      %p190 = por %p188, %p189
      %s192 = sadd.s32 %s191, 1
      %p195 = scmp.eq.s32.totalorder %s26, 3
      %p196 = scmp.ne.s32.totalorder %s191, %s193
      %p197 = scmp.eq.s32.totalorder %s26, 0
      %p198 = por %p196, %p197
      %p199 = scmp.ne.s32.totalorder %s191, %s193
      %p200 = scmp.eq.s32.totalorder %s31, 3
      %p201 = por %p199, %p200
      %p202 = scmp.ne.s32.totalorder %s193, %s194
      %p203 = scmp.eq.s32.totalorder %s31, 0
      %p204 = por %p202, %p203
      %p205 = scmp.ne.s32.totalorder %s193, %s194
      %p206 = scmp.eq.s32.totalorder %s32, 3
      %p207 = por %p205, %p206
      %p209 = scmp.ne.s32.totalorder %s194, %s208
      %p210 = scmp.eq.s32.totalorder %s32, 0
      %p211 = por %p209, %p210
      %s213 = sadd.s32 %s212, 1
      %p216 = scmp.eq.s32.totalorder %s26, 3
      %p217 = scmp.ne.s32.totalorder %s212, %s214
      %p218 = scmp.eq.s32.totalorder %s26, 0
      %p219 = por %p217, %p218
      %p220 = scmp.ne.s32.totalorder %s212, %s214
      %p221 = scmp.eq.s32.totalorder %s31, 3
      %p222 = por %p220, %p221
      %p223 = scmp.ne.s32.totalorder %s214, %s215
      %p224 = scmp.eq.s32.totalorder %s31, 0
      %p225 = por %p223, %p224
      %p226 = scmp.ne.s32.totalorder %s214, %s215
      %p227 = scmp.eq.s32.totalorder %s32, 3
      %p228 = por %p226, %p227
      %p230 = scmp.ne.s32.totalorder %s215, %s229
      %p231 = scmp.eq.s32.totalorder %s32, 0
      %p232 = por %p230, %p231
      %s234 = sadd.s32 %s233, 1
      %p237 = scmp.eq.s32.totalorder %s26, 3
      %p238 = scmp.ne.s32.totalorder %s233, %s235
      %p239 = scmp.eq.s32.totalorder %s26, 0
      %p240 = por %p238, %p239
      %p241 = scmp.ne.s32.totalorder %s233, %s235
      %p242 = scmp.eq.s32.totalorder %s31, 3
      %p243 = por %p241, %p242
      %p244 = scmp.ne.s32.totalorder %s235, %s236
      %p245 = scmp.eq.s32.totalorder %s31, 0
      %p246 = por %p244, %p245
      %p247 = scmp.ne.s32.totalorder %s235, %s236
      %p248 = scmp.eq.s32.totalorder %s32, 3
      %p249 = por %p247, %p248
      %p251 = scmp.ne.s32.totalorder %s236, %s250
      %p252 = scmp.eq.s32.totalorder %s32, 0
      %p253 = por %p251, %p252
      %s254 = ssub.s32 %s26, %s33
      %p255 = scmp.eq.s32.totalorder %s254, 0
      %s257 = sadd.s32 %s256, 1
      %s258 = scalar_select %p255, %s256, %s257
      %p261 = pneg %p255
      %p262 = scmp.eq.s32.totalorder %s26, 3
      %p263 = por %p261, %p262
      %p264 = scmp.ne.s32.totalorder %s256, %s259
      %p265 = scmp.eq.s32.totalorder %s26, 0
      %p266 = por %p264, %p265
      %p267 = scmp.ne.s32.totalorder %s256, %s259
      %p268 = scmp.eq.s32.totalorder %s31, 3
      %p269 = por %p267, %p268
      %p270 = scmp.ne.s32.totalorder %s259, %s260
      %p271 = scmp.eq.s32.totalorder %s31, 0
      %p272 = por %p270, %p271
      %p273 = scmp.ne.s32.totalorder %s259, %s260
      %p274 = scmp.eq.s32.totalorder %s32, 3
      %p275 = por %p273, %p274
      %p277 = scmp.ne.s32.totalorder %s260, %s276
      %p278 = scmp.eq.s32.totalorder %s32, 0
      %p279 = por %p277, %p278
      %p280 = scmp.le.s32.totalorder 1, %s26
      %p281 = scmp.lt.s32.totalorder %s26, 5
      %p282 = pnand %p280, %p281
      %p283 = pneg %p282
      // Predicated region
      $region9: #{tpu_custom_call.1} parent=5 // pred_check
        _
      $region10: #{tpu_custom_call.1} parent=5 // pred_check_branch
        %285 = sbr.rel (%p282) target = $region12
      $region11: #{tpu_custom_call.1} parent=5 // pred_region
        %s286 = ssub.s32 %s26, 1
        // Predicated region
        $region13: #{tpu_custom_call.1} parent=11 // pred_check
          %p287 = pneg %p99
        $region14: #{tpu_custom_call.1} parent=11 // pred_check_branch
          %289 = sbr.rel (%p287) target = $region16
        $region15: #{tpu_custom_call.1} parent=11 // pred_region
          _
        $region16: #{tpu_custom_call.1} parent=11 // pred_fallthru
          _
        // Predicated region
        $region17: #{tpu_custom_call.1} parent=11 // pred_check
          %p290 = pneg %p120
        $region18: #{tpu_custom_call.1} parent=11 // pred_check_branch
          %292 = sbr.rel (%p290) target = $region20
        $region19: #{tpu_custom_call.1} parent=11 // pred_region
          _
        $region20: #{tpu_custom_call.1} parent=11 // pred_fallthru
          _
        // Predicated region
        $region21: #{tpu_custom_call.1} parent=11 // pred_check
          %p293 = pneg %p141
        $region22: #{tpu_custom_call.1} parent=11 // pred_check_branch
          %295 = sbr.rel (%p293) target = $region24
        $region23: #{tpu_custom_call.1} parent=11 // pred_region
          %s297 = ssub.s32 4096, 4096
          %298 = vsyncadd [#allocation6], %s297
          %s299 = sshll.u32 [#allocation7], 4
          %s300 = int_to_ptr.vmem [resolvable:$true] %s299
          %305 = dma.hbm_to_vmem [thread:$0]  %s4, 4096, %s300, [#allocation6], 128, 128, 8
        $region24: #{tpu_custom_call.1} parent=11 // pred_fallthru
          _
        // Predicated region
        $region25: #{tpu_custom_call.1} parent=11 // pred_check
          %p306 = pneg %p162
        $region26: #{tpu_custom_call.1} parent=11 // pred_check_branch
          %308 = sbr.rel (%p306) target = $region28
        $region27: #{tpu_custom_call.1} parent=11 // pred_region
          _
        $region28: #{tpu_custom_call.1} parent=11 // pred_fallthru
          _
        // Predicated region
        $region29: #{tpu_custom_call.1} parent=11 // pred_check
          %p309 = pneg %p183
        $region30: #{tpu_custom_call.1} parent=11 // pred_check_branch
          %311 = sbr.rel (%p309) target = $region32
        $region31: #{tpu_custom_call.1} parent=11 // pred_region
          _
        $region32: #{tpu_custom_call.1} parent=11 // pred_fallthru
          _
        // Predicated region
        $region33: #{tpu_custom_call.1} parent=11 // pred_check
          %p312 = pneg %p204
        $region34: #{tpu_custom_call.1} parent=11 // pred_check_branch
          %314 = sbr.rel (%p312) target = $region36
        $region35: #{tpu_custom_call.1} parent=11 // pred_region
          _
        $region36: #{tpu_custom_call.1} parent=11 // pred_fallthru
          _
        // Predicated region
        $region37: #{tpu_custom_call.1} parent=11 // pred_check
          %p315 = pneg %p225
        $region38: #{tpu_custom_call.1} parent=11 // pred_check_branch
          %317 = sbr.rel (%p315) target = $region40
        $region39: #{tpu_custom_call.1} parent=11 // pred_region
          %s319 = ssub.s32 2048, 2048
          %320 = vsyncadd [#allocation9], %s319
          %s321 = sshll.u32 [#allocation8], 4
          %s322 = int_to_ptr.vmem [resolvable:$true] %s321
          %327 = dma.hbm_to_vmem [thread:$0]  %s8, 2048, %s322, [#allocation9], 64, 64, 4
        $region40: #{tpu_custom_call.1} parent=11 // pred_fallthru
          _
        // Predicated region
        $region41: #{tpu_custom_call.1} parent=11 // pred_check
          %p328 = pneg %p246
        $region42: #{tpu_custom_call.1} parent=11 // pred_check_branch
          %330 = sbr.rel (%p328) target = $region44
        $region43: #{tpu_custom_call.1} parent=11 // pred_region
          _
        $region44: #{tpu_custom_call.1} parent=11 // pred_fallthru
          _
      $region12: #{tpu_custom_call.1} parent=5 // pred_fallthru
        _
      %p331 = scmp.lt.s32.totalorder %s26, 4
      // Predicated region
      $region45: #{tpu_custom_call.1} parent=5 // pred_check
        %p332 = pneg %p331
      $region46: #{tpu_custom_call.1} parent=5 // pred_check_branch
        %334 = sbr.rel (%p332) target = $region48
      $region47: #{tpu_custom_call.1} parent=5 // pred_region
        // Predicated region
        $region49: #{tpu_custom_call.1} parent=47 // pred_check
          %p335 = pneg %p46
        $region50: #{tpu_custom_call.1} parent=47 // pred_check_branch
          %337 = sbr.rel (%p335) target = $region52
        $region51: #{tpu_custom_call.1} parent=47 // pred_region
          %s338 = sand.u32 %s36, 1
          %s339 = scalar_lea.sflag [#allocation3], %s338
          %s340 = sand.u32 %s36, 1
          %s341 = smul.addr %s340, 64
          %s342 = scalar_lea.vmem [#allocation2], %s341
          %s343 = smul.u32 8, %s26
          %s345 = ssub.s32 1024, 1024
          %346 = vsyncadd %s339, %s345
          %s347 = smul.addr %s343, 128
          %s348 = scalar_lea.hbm %s0, %s347
          %s349 = sshll.u32 %s342, 4
          %s350 = int_to_ptr.vmem [resolvable:$true] %s349
          %355 = dma.hbm_to_vmem [thread:$0]  %s348, 1024, %s350, %s339, 128, 128, 8
        $region52: #{tpu_custom_call.1} parent=47 // pred_fallthru
          _
        // Predicated region
        $region53: #{tpu_custom_call.1} parent=47 // pred_check
          %p356 = pneg %p72
        $region54: #{tpu_custom_call.1} parent=47 // pred_check_branch
          %358 = sbr.rel (%p356) target = $region56
        $region55: #{tpu_custom_call.1} parent=47 // pred_region
          %s359 = sand.u32 %s26, 1
          %s360 = scalar_lea.sflag [#allocation6], %s359
          %s361 = sand.u32 %s62, 1
          %s362 = smul.addr %s361, 64
          %s363 = scalar_lea.vmem [#allocation5], %s362
          %s364 = smul.u32 8, %s26
          %s366 = ssub.s32 1024, 1024
          %367 = vsyncadd %s360, %s366
          %s368 = smul.addr %s364, 128
          %s369 = scalar_lea.hbm %s1, %s368
          %s370 = sshll.u32 %s363, 4
          %s371 = int_to_ptr.vmem [resolvable:$true] %s370
          %376 = dma.hbm_to_vmem [thread:$0]  %s369, 1024, %s371, %s360, 128, 128, 8
        $region56: #{tpu_custom_call.1} parent=47 // pred_fallthru
          _
      $region48: #{tpu_custom_call.1} parent=5 // pred_fallthru
        _
      %p377 = scmp.le.s32.totalorder 1, %s26
      %p378 = scmp.lt.s32.totalorder %s26, 5
      %p379 = pnand %p377, %p378
      %p380 = pneg %p379
      // Predicated region
      $region57: #{tpu_custom_call.1} parent=5 // pred_check
        _
      $region58: #{tpu_custom_call.1} parent=5 // pred_check_branch
        %382 = sbr.rel (%p379) target = $region60
      $region59: #{tpu_custom_call.1} parent=5 // pred_region
        %s383 = ssub.s32 %s26, 1
        %s384 = sand.u32 %s39, 1
        %s385 = scalar_lea.sflag [#allocation3], %s384
        %s386 = sand.u32 %s39, 1
        %s387 = smul.addr %s386, 64
        %s388 = scalar_lea.vmem [#allocation2], %s387
        // Predicated region
        $region61: #{tpu_custom_call.1} parent=59 // pred_check
          %p389 = pneg %p52
        $region62: #{tpu_custom_call.1} parent=59 // pred_check_branch
          %391 = sbr.rel (%p389) target = $region64
        $region63: #{tpu_custom_call.1} parent=59 // pred_region
          %392 = dma.done %s385, 1024
        $region64: #{tpu_custom_call.1} parent=59 // pred_fallthru
          _
        %s393 = sand.u32 %s31, 1
        %s394 = scalar_lea.sflag [#allocation6], %s393
        %s395 = sand.u32 %s65, 1
        %s396 = smul.addr %s395, 64
        %s397 = scalar_lea.vmem [#allocation5], %s396
        // Predicated region
        $region65: #{tpu_custom_call.1} parent=59 // pred_check
          %p398 = pneg %p78
        $region66: #{tpu_custom_call.1} parent=59 // pred_check_branch
          %400 = sbr.rel (%p398) target = $region68
        $region67: #{tpu_custom_call.1} parent=59 // pred_region
          %401 = dma.done %s394, 1024
        $region68: #{tpu_custom_call.1} parent=59 // pred_fallthru
          _
        // Predicated region
        $region69: #{tpu_custom_call.1} parent=59 // pred_check
          %p402 = pneg %p141
        $region70: #{tpu_custom_call.1} parent=59 // pred_check_branch
          %404 = sbr.rel (%p402) target = $region72
        $region71: #{tpu_custom_call.1} parent=59 // pred_region
          %405 = dma.done [#allocation6], 4096
        $region72: #{tpu_custom_call.1} parent=59 // pred_fallthru
          _
        // Predicated region
        $region73: #{tpu_custom_call.1} parent=59 // pred_check
          %p406 = pneg %p225
        $region74: #{tpu_custom_call.1} parent=59 // pred_check_branch
          %408 = sbr.rel (%p406) target = $region76
        $region75: #{tpu_custom_call.1} parent=59 // pred_region
          %409 = dma.done [#allocation9], 2048
        $region76: #{tpu_custom_call.1} parent=59 // pred_fallthru
          _
        %s410 = sand.u32 %s39, 1
        %s411 = scalar_lea.sflag [#allocation3], %s410
        %s412 = sand.u32 %s39, 1
        %s413 = smul.addr %s412, 64
        %s414 = scalar_lea.vmem [#allocation2], %s413
        %p415 = pneg %p52
        %p416 = pneg %p49
        %s417 = sand.u32 %s31, 1
        %s418 = scalar_lea.sflag [#allocation6], %s417
        %s419 = sand.u32 %s65, 1
        %s420 = smul.addr %s419, 64
        %s421 = scalar_lea.vmem [#allocation5], %s420
        %p422 = pneg %p78
        %p423 = pneg %p75
        %p424 = pneg %p99
        %p425 = pneg %p96
        %p426 = pneg %p120
        %p427 = pneg %p117
        %p428 = pneg %p141
        %p429 = pneg %p138
        %p430 = pneg %p162
        %p431 = pneg %p159
        %p432 = pneg %p183
        %p433 = pneg %p180
        %p434 = pneg %p204
        %p435 = pneg %p201
        %p436 = pneg %p225
        %p437 = pneg %p222
        %p438 = pneg %p246
        %p439 = pneg %p243
        %p440 = pneg %p272
        %p441 = pneg %p269
        %s442 = sand.u32 %s259, 1
        %s443 = scalar_lea.sflag [#allocation4], %s442
        %s444 = sand.u32 %s259, 1
        %s445 = smul.addr %s444, 64
        %s446 = scalar_lea.vmem [#allocation10], %s445
        %s447 = smul.u32 8, %s31
        %s448 = smul.u32 8, %s31
        %s449 = smul.u32 8, %s31
        %v451 = vld [vmem:[%s388] sm:$0xff]
        %v452 = vld [vmem:[%s388 + $0x8] sm:$0xff]
        %v453 = vld [vmem:[%s388 + $0x10] sm:$0xff]
        %v454 = vld [vmem:[%s388 + $0x18] sm:$0xff]
        %v455 = vld [vmem:[%s388 + $0x20] sm:$0xff]
        %v456 = vld [vmem:[%s388 + $0x28] sm:$0xff]
        %v457 = vld [vmem:[%s388 + $0x30] sm:$0xff]
        %v458 = vld [vmem:[%s388 + $0x38] sm:$0xff]
        %v459 = vld [vmem:[%s2] sm:$0x1]
        %v460 = vld [vmem:[%s3] sm:$0x1]
        %461 = vadd.xlane.f32.xlu0 %v451
        %v462 = vpop.xlane.xlu0 %461
        %463 = vadd.xlane.f32.xlu0 %v452
        %v464 = vpop.xlane.xlu0 %463
        %465 = vadd.xlane.f32.xlu0 %v453
        %v466 = vpop.xlane.xlu0 %465
        %467 = vadd.xlane.f32.xlu0 %v454
        %v468 = vpop.xlane.xlu0 %467
        %469 = vadd.xlane.f32.xlu0 %v455
        %v470 = vpop.xlane.xlu0 %469
        %471 = vadd.xlane.f32.xlu0 %v456
        %v472 = vpop.xlane.xlu0 %471
        %473 = vadd.xlane.f32.xlu0 %v457
        %v474 = vpop.xlane.xlu0 %473
        %475 = vadd.xlane.f32.xlu0 %v458
        %v476 = vpop.xlane.xlu0 %475
        %v477 = vrcp.pop 128.0
        %v478 = vmul.f32 %v462, %v477
        %v479 = vmul.f32 %v464, %v477
        %v480 = vmul.f32 %v466, %v477
        %v481 = vmul.f32 %v468, %v477
        %v482 = vmul.f32 %v470, %v477
        %v483 = vmul.f32 %v472, %v477
        %v484 = vmul.f32 %v474, %v477
        %v485 = vmul.f32 %v476, %v477
        %v486 = vsub.f32 %v451, %v478
        %v487 = vsub.f32 %v452, %v479
        %v488 = vsub.f32 %v453, %v480
        %v489 = vsub.f32 %v454, %v481
        %v490 = vsub.f32 %v455, %v482
        %v491 = vsub.f32 %v456, %v483
        %v492 = vsub.f32 %v457, %v484
        %v493 = vsub.f32 %v458, %v485
        %v494 = vmul.f32 %v486, %v486
        %v495 = vmul.f32 %v487, %v487
        %v496 = vmul.f32 %v488, %v488
        %v497 = vmul.f32 %v489, %v489
        %v498 = vmul.f32 %v490, %v490
        %v499 = vmul.f32 %v491, %v491
        %v500 = vmul.f32 %v492, %v492
        %v501 = vmul.f32 %v493, %v493
        %502 = vadd.xlane.f32.xlu0 %v494
        %v503 = vpop.xlane.xlu0 %502
        %504 = vadd.xlane.f32.xlu0 %v495
        %v505 = vpop.xlane.xlu0 %504
        %506 = vadd.xlane.f32.xlu0 %v496
        %v507 = vpop.xlane.xlu0 %506
        %508 = vadd.xlane.f32.xlu0 %v497
        %v509 = vpop.xlane.xlu0 %508
        %510 = vadd.xlane.f32.xlu0 %v498
        %v511 = vpop.xlane.xlu0 %510
        %512 = vadd.xlane.f32.xlu0 %v499
        %v513 = vpop.xlane.xlu0 %512
        %514 = vadd.xlane.f32.xlu0 %v500
        %v515 = vpop.xlane.xlu0 %514
        %516 = vadd.xlane.f32.xlu0 %v501
        %v517 = vpop.xlane.xlu0 %516
        %v518 = vmul.f32 %v503, %v477
        %v519 = vmul.f32 %v505, %v477
        %v520 = vmul.f32 %v507, %v477
        %v521 = vmul.f32 %v509, %v477
        %v522 = vmul.f32 %v511, %v477
        %v523 = vmul.f32 %v513, %v477
        %v524 = vmul.f32 %v515, %v477
        %v525 = vmul.f32 %v517, %v477
        %v526 = vadd.f32 %v518, 1e-05
        %v527 = vadd.f32 %v519, 1e-05
        %v528 = vadd.f32 %v520, 1e-05
        %v529 = vadd.f32 %v521, 1e-05
        %v530 = vadd.f32 %v522, 1e-05
        %v531 = vadd.f32 %v523, 1e-05
        %v532 = vadd.f32 %v524, 1e-05
        %v533 = vadd.f32 %v525, 1e-05
        %v534 = vrsqrt.pop %v526
        %v535 = vrsqrt.pop %v527
        %v536 = vrsqrt.pop %v528
        %v537 = vrsqrt.pop %v529
        %v538 = vrsqrt.pop %v530
        %v539 = vrsqrt.pop %v531
        %v540 = vrsqrt.pop %v532
        %v541 = vrsqrt.pop %v533
        %v542 = vmul.f32 %v486, %v534
        %v543 = vmul.f32 %v487, %v535
        %v544 = vmul.f32 %v488, %v536
        %v545 = vmul.f32 %v489, %v537
        %v546 = vmul.f32 %v490, %v538
        %v547 = vmul.f32 %v491, %v539
        %v548 = vmul.f32 %v492, %v540
        %v549 = vmul.f32 %v493, %v541
        %v551 = vlaneseq
        %v552 = vshrl.u32 %v551, 7
        %v553 = vsub.s32 0, %v552
        %v554 = vrot.slane %v459, %v553
        %v556 = vmul.f32 %v542, %v554
        %v557 = vmul.f32 %v543, %v554
        %v558 = vmul.f32 %v544, %v554
        %v559 = vmul.f32 %v545, %v554
        %v560 = vmul.f32 %v546, %v554
        %v561 = vmul.f32 %v547, %v554
        %v562 = vmul.f32 %v548, %v554
        %v563 = vmul.f32 %v549, %v554
        %v565 = vlaneseq
        %v566 = vshrl.u32 %v565, 7
        %v567 = vsub.s32 0, %v566
        %v568 = vrot.slane %v460, %v567
        %v570 = vadd.f32 %v556, %v568
        %v571 = vadd.f32 %v557, %v568
        %v572 = vadd.f32 %v558, %v568
        %v573 = vadd.f32 %v559, %v568
        %v574 = vadd.f32 %v560, %v568
        %v575 = vadd.f32 %v561, %v568
        %v576 = vadd.f32 %v562, %v568
        %v577 = vadd.f32 %v563, %v568
        %v578 = vxor.u32 %v570, 2147483648
        %v579 = vxor.u32 %v571, 2147483648
        %v580 = vxor.u32 %v572, 2147483648
        %v581 = vxor.u32 %v573, 2147483648
        %v582 = vxor.u32 %v574, 2147483648
        %v583 = vxor.u32 %v575, 2147483648
        %v584 = vxor.u32 %v576, 2147483648
        %v585 = vxor.u32 %v577, 2147483648
        %v586 = vmul.f32 %v578, 1.442695
        %v587 = vpow.pop %v586
        %v588 = vmul.f32 %v579, 1.442695
        %v589 = vpow.pop %v588
        %v590 = vmul.f32 %v580, 1.442695
        %v591 = vpow.pop %v590
        %v592 = vmul.f32 %v581, 1.442695
        %v593 = vpow.pop %v592
        %v594 = vmul.f32 %v582, 1.442695
        %v595 = vpow.pop %v594
        %v596 = vmul.f32 %v583, 1.442695
        %v597 = vpow.pop %v596
        %v598 = vmul.f32 %v584, 1.442695
        %v599 = vpow.pop %v598
        %v600 = vmul.f32 %v585, 1.442695
        %v601 = vpow.pop %v600
        %v602 = vadd.f32 %v587, 1.0
        %v603 = vadd.f32 %v589, 1.0
        %v604 = vadd.f32 %v591, 1.0
        %v605 = vadd.f32 %v593, 1.0
        %v606 = vadd.f32 %v595, 1.0
        %v607 = vadd.f32 %v597, 1.0
        %v608 = vadd.f32 %v599, 1.0
        %v609 = vadd.f32 %v601, 1.0
        %v610 = vrcp.pop %v602
        %v611 = vmul.f32 1.0, %v610
        %v612 = vrcp.pop %v603
        %v613 = vmul.f32 1.0, %v612
        %v614 = vrcp.pop %v604
        %v615 = vmul.f32 1.0, %v614
        %v616 = vrcp.pop %v605
        %v617 = vmul.f32 1.0, %v616
        %v618 = vrcp.pop %v606
        %v619 = vmul.f32 1.0, %v618
        %v620 = vrcp.pop %v607
        %v621 = vmul.f32 1.0, %v620
        %v622 = vrcp.pop %v608
        %v623 = vmul.f32 1.0, %v622
        %v624 = vrcp.pop %v609
        %v625 = vmul.f32 1.0, %v624
        %v626 = vmul.f32 %v570, %v611
        %v627 = vmul.f32 %v571, %v613
        %v628 = vmul.f32 %v572, %v615
        %v629 = vmul.f32 %v573, %v617
        %v630 = vmul.f32 %v574, %v619
        %v631 = vmul.f32 %v575, %v621
        %v632 = vmul.f32 %v576, %v623
        %v633 = vmul.f32 %v577, %v625
        %v634 = vld [vmem:[%s397] sm:$0xff]
        %v635 = vld [vmem:[%s397 + $0x8] sm:$0xff]
        %v636 = vld [vmem:[%s397 + $0x10] sm:$0xff]
        %v637 = vld [vmem:[%s397 + $0x18] sm:$0xff]
        %v638 = vld [vmem:[%s397 + $0x20] sm:$0xff]
        %v639 = vld [vmem:[%s397 + $0x28] sm:$0xff]
        %v640 = vld [vmem:[%s397 + $0x30] sm:$0xff]
        %v641 = vld [vmem:[%s397 + $0x38] sm:$0xff]
        %v642 = vxor.u32 %v634, 2147483648
        %v643 = vxor.u32 %v635, 2147483648
        %v644 = vxor.u32 %v636, 2147483648
        %v645 = vxor.u32 %v637, 2147483648
        %v646 = vxor.u32 %v638, 2147483648
        %v647 = vxor.u32 %v639, 2147483648
        %v648 = vxor.u32 %v640, 2147483648
        %v649 = vxor.u32 %v641, 2147483648
        %v650 = vmul.f32 %v642, 1.442695
        %v651 = vpow.pop %v650
        %v652 = vmul.f32 %v643, 1.442695
        %v653 = vpow.pop %v652
        %v654 = vmul.f32 %v644, 1.442695
        %v655 = vpow.pop %v654
        %v656 = vmul.f32 %v645, 1.442695
        %v657 = vpow.pop %v656
        %v658 = vmul.f32 %v646, 1.442695
        %v659 = vpow.pop %v658
        %v660 = vmul.f32 %v647, 1.442695
        %v661 = vpow.pop %v660
        %v662 = vmul.f32 %v648, 1.442695
        %v663 = vpow.pop %v662
        %v664 = vmul.f32 %v649, 1.442695
        %v665 = vpow.pop %v664
        %v666 = vadd.f32 %v651, 1.0
        %v667 = vadd.f32 %v653, 1.0
        %v668 = vadd.f32 %v655, 1.0
        %v669 = vadd.f32 %v657, 1.0
        %v670 = vadd.f32 %v659, 1.0
        %v671 = vadd.f32 %v661, 1.0
        %v672 = vadd.f32 %v663, 1.0
        %v673 = vadd.f32 %v665, 1.0
        %v674 = vrcp.pop %v666
        %v675 = vmul.f32 1.0, %v674
        %v676 = vrcp.pop %v667
        %v677 = vmul.f32 1.0, %v676
        %v678 = vrcp.pop %v668
        %v679 = vmul.f32 1.0, %v678
        %v680 = vrcp.pop %v669
        %v681 = vmul.f32 1.0, %v680
        %v682 = vrcp.pop %v670
        %v683 = vmul.f32 1.0, %v682
        %v684 = vrcp.pop %v671
        %v685 = vmul.f32 1.0, %v684
        %v686 = vrcp.pop %v672
        %v687 = vmul.f32 1.0, %v686
        %v688 = vrcp.pop %v673
        %v689 = vmul.f32 1.0, %v688
        %v690 = vmul.f32 %v634, %v675
        %v691 = vmul.f32 %v635, %v677
        %v692 = vmul.f32 %v636, %v679
        %v693 = vmul.f32 %v637, %v681
        %v694 = vmul.f32 %v638, %v683
        %v695 = vmul.f32 %v639, %v685
        %v696 = vmul.f32 %v640, %v687
        %v697 = vmul.f32 %v641, %v689
        %v698 = vpack.c.bf16 %v627, %v626
        %v699 = vpack.c.bf16 %v629, %v628
        %v700 = vpack.c.bf16 %v631, %v630
        %v701 = vpack.c.bf16 %v633, %v632
        %v702 = vpack.c.bf16 %v691, %v690
        %v703 = vpack.c.bf16 %v693, %v692
        %v704 = vpack.c.bf16 %v695, %v694
        %v705 = vpack.c.bf16 %v697, %v696
        %v706 = vld [vmem:[#allocation7] sm:$0xff]
        %v707 = vld [vmem:[#allocation7 + $0x8] sm:$0xff]
        %v708 = vld [vmem:[#allocation7 + $0x10] sm:$0xff]
        %v709 = vld [vmem:[#allocation7 + $0x18] sm:$0xff]
        %v710 = vld [vmem:[#allocation7 + $0x20] sm:$0xff]
        %v711 = vld [vmem:[#allocation7 + $0x28] sm:$0xff]
        %v712 = vld [vmem:[#allocation7 + $0x30] sm:$0xff]
        %v713 = vld [vmem:[#allocation7 + $0x38] sm:$0xff]
        %v714 = vld [vmem:[#allocation7 + $0x40] sm:$0xff]
        %v715 = vld [vmem:[#allocation7 + $0x48] sm:$0xff]
        %v716 = vld [vmem:[#allocation7 + $0x50] sm:$0xff]
        %v717 = vld [vmem:[#allocation7 + $0x58] sm:$0xff]
        %v718 = vld [vmem:[#allocation7 + $0x60] sm:$0xff]
        %v719 = vld [vmem:[#allocation7 + $0x68] sm:$0xff]
        %v720 = vld [vmem:[#allocation7 + $0x70] sm:$0xff]
        %v721 = vld [vmem:[#allocation7 + $0x78] sm:$0xff]
        %v722 = vld [vmem:[#allocation7 + $0x80] sm:$0xff]
        %v723 = vld [vmem:[#allocation7 + $0x88] sm:$0xff]
        %v724 = vld [vmem:[#allocation7 + $0x90] sm:$0xff]
        %v725 = vld [vmem:[#allocation7 + $0x98] sm:$0xff]
        %v726 = vld [vmem:[#allocation7 + $0xa0] sm:$0xff]
        %v727 = vld [vmem:[#allocation7 + $0xa8] sm:$0xff]
        %v728 = vld [vmem:[#allocation7 + $0xb0] sm:$0xff]
        %v729 = vld [vmem:[#allocation7 + $0xb8] sm:$0xff]
        %v730 = vld [vmem:[#allocation7 + $0xc0] sm:$0xff]
        %v731 = vld [vmem:[#allocation7 + $0xc8] sm:$0xff]
        %v732 = vld [vmem:[#allocation7 + $0xd0] sm:$0xff]
        %v733 = vld [vmem:[#allocation7 + $0xd8] sm:$0xff]
        %v734 = vld [vmem:[#allocation7 + $0xe0] sm:$0xff]
        %v735 = vld [vmem:[#allocation7 + $0xe8] sm:$0xff]
        %v736 = vld [vmem:[#allocation7 + $0xf0] sm:$0xff]
        %v737 = vld [vmem:[#allocation7 + $0xf8] sm:$0xff]
        %v738 = vld [vmem:[%s5] sm:$0x3]
        %v740 = vlaneseq
        %v741 = vshrl.u32 %v740, 7
        %v742 = vsub.s32 0, %v741
        %v743 = vrot.slane %v738, %v742
        %v744 = vlaneseq
        %v745 = vshrl.u32 %v744, 7
        %v746 = vsub.s32 1, %v745
        %v747 = vrot.slane %v738, %v746
        %v782 = vunpack.c.l.b16 %v706
        %v783 = vunpack.c.h.b16 %v706
        %v784 = vunpack.c.l.b16 %v707
        %v785 = vunpack.c.h.b16 %v707
        %v786 = vunpack.c.l.b16 %v708
        %v787 = vunpack.c.h.b16 %v708
        %v788 = vunpack.c.l.b16 %v709
        %v789 = vunpack.c.h.b16 %v709
        %v790 = vunpack.c.l.b16 %v710
        %v791 = vunpack.c.h.b16 %v710
        %v792 = vunpack.c.l.b16 %v711
        %v793 = vunpack.c.h.b16 %v711
        %v794 = vunpack.c.l.b16 %v712
        %v795 = vunpack.c.h.b16 %v712
        %v796 = vunpack.c.l.b16 %v713
        %v797 = vunpack.c.h.b16 %v713
        %v798 = vunpack.c.l.b16 %v714
        %v799 = vunpack.c.h.b16 %v714
        %v800 = vunpack.c.l.b16 %v715
        %v801 = vunpack.c.h.b16 %v715
        %v802 = vunpack.c.l.b16 %v716
        %v803 = vunpack.c.h.b16 %v716
        %v804 = vunpack.c.l.b16 %v717
        %v805 = vunpack.c.h.b16 %v717
        %v806 = vunpack.c.l.b16 %v718
        %v807 = vunpack.c.h.b16 %v718
        %v808 = vunpack.c.l.b16 %v719
        %v809 = vunpack.c.h.b16 %v719
        %v810 = vunpack.c.l.b16 %v720
        %v811 = vunpack.c.h.b16 %v720
        %v812 = vunpack.c.l.b16 %v721
        %v813 = vunpack.c.h.b16 %v721
        %v814 = vunpack.c.l.b16 %v722
        %v815 = vunpack.c.h.b16 %v722
        %v816 = vunpack.c.l.b16 %v723
        %v817 = vunpack.c.h.b16 %v723
        %v818 = vunpack.c.l.b16 %v724
        %v819 = vunpack.c.h.b16 %v724
        %v820 = vunpack.c.l.b16 %v725
        %v821 = vunpack.c.h.b16 %v725
        %v822 = vunpack.c.l.b16 %v726
        %v823 = vunpack.c.h.b16 %v726
        %v824 = vunpack.c.l.b16 %v727
        %v825 = vunpack.c.h.b16 %v727
        %v826 = vunpack.c.l.b16 %v728
        %v827 = vunpack.c.h.b16 %v728
        %v828 = vunpack.c.l.b16 %v729
        %v829 = vunpack.c.h.b16 %v729
        %v830 = vunpack.c.l.b16 %v730
        %v831 = vunpack.c.h.b16 %v730
        %v832 = vunpack.c.l.b16 %v731
        %v833 = vunpack.c.h.b16 %v731
        %v834 = vunpack.c.l.b16 %v732
        %v835 = vunpack.c.h.b16 %v732
        %v836 = vunpack.c.l.b16 %v733
        %v837 = vunpack.c.h.b16 %v733
        %v838 = vunpack.c.l.b16 %v734
        %v839 = vunpack.c.h.b16 %v734
        %v840 = vunpack.c.l.b16 %v735
        %v841 = vunpack.c.h.b16 %v735
        %v842 = vunpack.c.l.b16 %v736
        %v843 = vunpack.c.h.b16 %v736
        %v844 = vunpack.c.l.b16 %v737
        %v845 = vunpack.c.h.b16 %v737
        %v846 = vpack.c.b16 %v784, %v782
        %v847 = vpack.c.b16 %v785, %v783
        %v848 = vpack.c.b16 %v788, %v786
        %v849 = vpack.c.b16 %v789, %v787
        %v850 = vpack.c.b16 %v792, %v790
        %v851 = vpack.c.b16 %v793, %v791
        %v852 = vpack.c.b16 %v796, %v794
        %v853 = vpack.c.b16 %v797, %v795
        %v854 = vpack.c.b16 %v800, %v798
        %v855 = vpack.c.b16 %v801, %v799
        %v856 = vpack.c.b16 %v804, %v802
        %v857 = vpack.c.b16 %v805, %v803
        %v858 = vpack.c.b16 %v808, %v806
        %v859 = vpack.c.b16 %v809, %v807
        %v860 = vpack.c.b16 %v812, %v810
        %v861 = vpack.c.b16 %v813, %v811
        %v862 = vpack.c.b16 %v816, %v814
        %v863 = vpack.c.b16 %v817, %v815
        %v864 = vpack.c.b16 %v820, %v818
        %v865 = vpack.c.b16 %v821, %v819
        %v866 = vpack.c.b16 %v824, %v822
        %v867 = vpack.c.b16 %v825, %v823
        %v868 = vpack.c.b16 %v828, %v826
        %v869 = vpack.c.b16 %v829, %v827
        %v870 = vpack.c.b16 %v832, %v830
        %v871 = vpack.c.b16 %v833, %v831
        %v872 = vpack.c.b16 %v836, %v834
        %v873 = vpack.c.b16 %v837, %v835
        %v874 = vpack.c.b16 %v840, %v838
        %v875 = vpack.c.b16 %v841, %v839
        %v876 = vpack.c.b16 %v844, %v842
        %v877 = vpack.c.b16 %v845, %v843
        %910 = vmatprep.subr.bf16.mxu0 %v847
        %911 = vmatpush1.bf16.msra.mxu0 %v846
        %912 = vmatprep.subr.bf16.mxu0 %v849
        %913 = vmatpush1.bf16.msra.mxu0 %v848
        %914 = vmatprep.subr.bf16.mxu0 %v851
        %915 = vmatpush1.bf16.msra.mxu0 %v850
        %916 = vmatprep.subr.bf16.mxu0 %v853
        %917 = vmatpush1.bf16.msra.mxu0 %v852
        %918 = vmatprep.subr.bf16.mxu0 %v855
        %919 = vmatpush1.bf16.msra.mxu0 %v854
        %920 = vmatprep.subr.bf16.mxu0 %v857
        %921 = vmatpush1.bf16.msra.mxu0 %v856
        %922 = vmatprep.subr.bf16.mxu0 %v859
        %923 = vmatpush1.bf16.msra.mxu0 %v858
        %924 = vmatprep.subr.bf16.mxu0 %v861
        %925 = vmatpush1.bf16.msra.mxu0 %v860
        %926 = vmatprep.subr.bf16.mxu0 %v863
        %927 = vmatpush1.bf16.msra.mxu0 %v862
        %928 = vmatprep.subr.bf16.mxu0 %v865
        %929 = vmatpush1.bf16.msra.mxu0 %v864
        %930 = vmatprep.subr.bf16.mxu0 %v867
        %931 = vmatpush1.bf16.msra.mxu0 %v866
        %932 = vmatprep.subr.bf16.mxu0 %v869
        %933 = vmatpush1.bf16.msra.mxu0 %v868
        %934 = vmatprep.subr.bf16.mxu0 %v871
        %935 = vmatpush1.bf16.msra.mxu0 %v870
        %936 = vmatprep.subr.bf16.mxu0 %v873
        %937 = vmatpush1.bf16.msra.mxu0 %v872
        %938 = vmatprep.subr.bf16.mxu0 %v875
        %939 = vmatpush1.bf16.msra.mxu0 %v874
        %940 = vmatprep.subr.bf16.mxu0 %v877
        %941 = vmatpush1.bf16.msra.mxu0 %v876
        %942 = vmatprep.mubr.bf16.mxu0 %v702
        %943 = vmatmul.mubr.bf16.gmra.mrb[0].mxu0 %v698
        %v944 = vpop.f32.mrb[0].mxu0
        %v945 = vadd.f32 %v743, %v944
        %v946 = vpop.f32.mrb[0].mxu0
        %v947 = vadd.f32 %v747, %v946
        %v948 = vpop.f32.mrb[0].mxu0
        %v949 = vadd.f32 %v743, %v948
        %v950 = vpop.f32.mrb[0].mxu0
        %v951 = vadd.f32 %v747, %v950
        %952 = vmatprep.mubr.bf16.mxu0 %v703
        %953 = vmatmul.mubr.bf16.gmra.mrb[0].mxu0 %v699
        %v954 = vpop.f32.mrb[0].mxu0
        %v955 = vadd.f32 %v743, %v954
        %v956 = vpop.f32.mrb[0].mxu0
        %v957 = vadd.f32 %v747, %v956
        %v958 = vpop.f32.mrb[0].mxu0
        %v959 = vadd.f32 %v743, %v958
        %v960 = vpop.f32.mrb[0].mxu0
        %v961 = vadd.f32 %v747, %v960
        %962 = vmatprep.mubr.bf16.mxu0 %v704
        %963 = vmatmul.mubr.bf16.gmra.mrb[0].mxu0 %v700
        %v964 = vpop.f32.mrb[0].mxu0
        %v965 = vadd.f32 %v743, %v964
        %v966 = vpop.f32.mrb[0].mxu0
        %v967 = vadd.f32 %v747, %v966
        %v968 = vpop.f32.mrb[0].mxu0
        %v969 = vadd.f32 %v743, %v968
        %v970 = vpop.f32.mrb[0].mxu0
        %v971 = vadd.f32 %v747, %v970
        %972 = vmatprep.mubr.bf16.mxu0 %v705
        %973 = vmatmul.mubr.bf16.gmra.mrb[0].mxu0 %v701
        %v974 = vpop.f32.mrb[0].mxu0
        %v975 = vadd.f32 %v743, %v974
        %v976 = vpop.f32.mrb[0].mxu0
        %v977 = vadd.f32 %v747, %v976
        %v978 = vpop.f32.mrb[0].mxu0
        %v979 = vadd.f32 %v743, %v978
        %v980 = vpop.f32.mrb[0].mxu0
        %v981 = vadd.f32 %v747, %v980
        %982 = vdwg.mxu0
        %v983 = vld [vmem:[%s6] sm:$0x3]
        %v984 = vld [vmem:[%s7] sm:$0x3]
        %v985 = vadd.f32 %v945, %v947
        %986 = vadd.xlane.f32.xlu0 %v985
        %v987 = vpop.xlane.xlu0 %986
        %v988 = vadd.f32 %v949, %v951
        %989 = vadd.xlane.f32.xlu0 %v988
        %v990 = vpop.xlane.xlu0 %989
        %v991 = vadd.f32 %v955, %v957
        %992 = vadd.xlane.f32.xlu0 %v991
        %v993 = vpop.xlane.xlu0 %992
        %v994 = vadd.f32 %v959, %v961
        %995 = vadd.xlane.f32.xlu0 %v994
        %v996 = vpop.xlane.xlu0 %995
        %v997 = vadd.f32 %v965, %v967
        %998 = vadd.xlane.f32.xlu0 %v997
        %v999 = vpop.xlane.xlu0 %998
        %v1000 = vadd.f32 %v969, %v971
        %1001 = vadd.xlane.f32.xlu0 %v1000
        %v1002 = vpop.xlane.xlu0 %1001
        %v1003 = vadd.f32 %v975, %v977
        %1004 = vadd.xlane.f32.xlu0 %v1003
        %v1005 = vpop.xlane.xlu0 %1004
        %v1006 = vadd.f32 %v979, %v981
        %1007 = vadd.xlane.f32.xlu0 %v1006
        %v1008 = vpop.xlane.xlu0 %1007
        %v1009 = vrcp.pop 256.0
        %v1010 = vmul.f32 %v987, %v1009
        %v1011 = vmul.f32 %v990, %v1009
        %v1012 = vmul.f32 %v993, %v1009
        %v1013 = vmul.f32 %v996, %v1009
        %v1014 = vmul.f32 %v999, %v1009
        %v1015 = vmul.f32 %v1002, %v1009
        %v1016 = vmul.f32 %v1005, %v1009
        %v1017 = vmul.f32 %v1008, %v1009
        %v1018 = vsub.f32 %v945, %v1010
        %v1019 = vsub.f32 %v947, %v1010
        %v1020 = vsub.f32 %v949, %v1011
        %v1021 = vsub.f32 %v951, %v1011
        %v1022 = vsub.f32 %v955, %v1012
        %v1023 = vsub.f32 %v957, %v1012
        %v1024 = vsub.f32 %v959, %v1013
        %v1025 = vsub.f32 %v961, %v1013
        %v1026 = vsub.f32 %v965, %v1014
        %v1027 = vsub.f32 %v967, %v1014
        %v1028 = vsub.f32 %v969, %v1015
        %v1029 = vsub.f32 %v971, %v1015
        %v1030 = vsub.f32 %v975, %v1016
        %v1031 = vsub.f32 %v977, %v1016
        %v1032 = vsub.f32 %v979, %v1017
        %v1033 = vsub.f32 %v981, %v1017
        %v1034 = vmul.f32 %v1018, %v1018
        %v1035 = vmul.f32 %v1019, %v1019
        %v1036 = vmul.f32 %v1020, %v1020
        %v1037 = vmul.f32 %v1021, %v1021
        %v1038 = vmul.f32 %v1022, %v1022
        %v1039 = vmul.f32 %v1023, %v1023
        %v1040 = vmul.f32 %v1024, %v1024
        %v1041 = vmul.f32 %v1025, %v1025
        %v1042 = vmul.f32 %v1026, %v1026
        %v1043 = vmul.f32 %v1027, %v1027
        %v1044 = vmul.f32 %v1028, %v1028
        %v1045 = vmul.f32 %v1029, %v1029
        %v1046 = vmul.f32 %v1030, %v1030
        %v1047 = vmul.f32 %v1031, %v1031
        %v1048 = vmul.f32 %v1032, %v1032
        %v1049 = vmul.f32 %v1033, %v1033
        %v1050 = vadd.f32 %v1034, %v1035
        %1051 = vadd.xlane.f32.xlu0 %v1050
        %v1052 = vpop.xlane.xlu0 %1051
        %v1053 = vadd.f32 %v1036, %v1037
        %1054 = vadd.xlane.f32.xlu0 %v1053
        %v1055 = vpop.xlane.xlu0 %1054
        %v1056 = vadd.f32 %v1038, %v1039
        %1057 = vadd.xlane.f32.xlu0 %v1056
        %v1058 = vpop.xlane.xlu0 %1057
        %v1059 = vadd.f32 %v1040, %v1041
        %1060 = vadd.xlane.f32.xlu0 %v1059
        %v1061 = vpop.xlane.xlu0 %1060
        %v1062 = vadd.f32 %v1042, %v1043
        %1063 = vadd.xlane.f32.xlu0 %v1062
        %v1064 = vpop.xlane.xlu0 %1063
        %v1065 = vadd.f32 %v1044, %v1045
        %1066 = vadd.xlane.f32.xlu0 %v1065
        %v1067 = vpop.xlane.xlu0 %1066
        %v1068 = vadd.f32 %v1046, %v1047
        %1069 = vadd.xlane.f32.xlu0 %v1068
        %v1070 = vpop.xlane.xlu0 %1069
        %v1071 = vadd.f32 %v1048, %v1049
        %1072 = vadd.xlane.f32.xlu0 %v1071
        %v1073 = vpop.xlane.xlu0 %1072
        %v1074 = vmul.f32 %v1052, %v1009
        %v1075 = vmul.f32 %v1055, %v1009
        %v1076 = vmul.f32 %v1058, %v1009
        %v1077 = vmul.f32 %v1061, %v1009
        %v1078 = vmul.f32 %v1064, %v1009
        %v1079 = vmul.f32 %v1067, %v1009
        %v1080 = vmul.f32 %v1070, %v1009
        %v1081 = vmul.f32 %v1073, %v1009
        %v1082 = vadd.f32 %v1074, 1e-05
        %v1083 = vadd.f32 %v1075, 1e-05
        %v1084 = vadd.f32 %v1076, 1e-05
        %v1085 = vadd.f32 %v1077, 1e-05
        %v1086 = vadd.f32 %v1078, 1e-05
        %v1087 = vadd.f32 %v1079, 1e-05
        %v1088 = vadd.f32 %v1080, 1e-05
        %v1089 = vadd.f32 %v1081, 1e-05
        %v1090 = vrsqrt.pop %v1082
        %v1091 = vrsqrt.pop %v1083
        %v1092 = vrsqrt.pop %v1084
        %v1093 = vrsqrt.pop %v1085
        %v1094 = vrsqrt.pop %v1086
        %v1095 = vrsqrt.pop %v1087
        %v1096 = vrsqrt.pop %v1088
        %v1097 = vrsqrt.pop %v1089
        %v1098 = vmul.f32 %v1018, %v1090
        %v1099 = vmul.f32 %v1019, %v1090
        %v1100 = vmul.f32 %v1020, %v1091
        %v1101 = vmul.f32 %v1021, %v1091
        %v1102 = vmul.f32 %v1022, %v1092
        %v1103 = vmul.f32 %v1023, %v1092
        %v1104 = vmul.f32 %v1024, %v1093
        %v1105 = vmul.f32 %v1025, %v1093
        %v1106 = vmul.f32 %v1026, %v1094
        %v1107 = vmul.f32 %v1027, %v1094
        %v1108 = vmul.f32 %v1028, %v1095
        %v1109 = vmul.f32 %v1029, %v1095
        %v1110 = vmul.f32 %v1030, %v1096
        %v1111 = vmul.f32 %v1031, %v1096
        %v1112 = vmul.f32 %v1032, %v1097
        %v1113 = vmul.f32 %v1033, %v1097
        %v1115 = vlaneseq
        %v1116 = vshrl.u32 %v1115, 7
        %v1117 = vsub.s32 0, %v1116
        %v1118 = vrot.slane %v983, %v1117
        %v1119 = vlaneseq
        %v1120 = vshrl.u32 %v1119, 7
        %v1121 = vsub.s32 1, %v1120
        %v1122 = vrot.slane %v983, %v1121
        %v1125 = vmul.f32 %v1098, %v1118
        %v1126 = vmul.f32 %v1099, %v1122
        %v1127 = vmul.f32 %v1100, %v1118
        %v1128 = vmul.f32 %v1101, %v1122
        %v1129 = vmul.f32 %v1102, %v1118
        %v1130 = vmul.f32 %v1103, %v1122
        %v1131 = vmul.f32 %v1104, %v1118
        %v1132 = vmul.f32 %v1105, %v1122
        %v1133 = vmul.f32 %v1106, %v1118
        %v1134 = vmul.f32 %v1107, %v1122
        %v1135 = vmul.f32 %v1108, %v1118
        %v1136 = vmul.f32 %v1109, %v1122
        %v1137 = vmul.f32 %v1110, %v1118
        %v1138 = vmul.f32 %v1111, %v1122
        %v1139 = vmul.f32 %v1112, %v1118
        %v1140 = vmul.f32 %v1113, %v1122
        %v1142 = vlaneseq
        %v1143 = vshrl.u32 %v1142, 7
        %v1144 = vsub.s32 0, %v1143
        %v1145 = vrot.slane %v984, %v1144
        %v1146 = vlaneseq
        %v1147 = vshrl.u32 %v1146, 7
        %v1148 = vsub.s32 1, %v1147
        %v1149 = vrot.slane %v984, %v1148
        %v1152 = vadd.f32 %v1125, %v1145
        %v1153 = vadd.f32 %v1126, %v1149
        %v1154 = vadd.f32 %v1127, %v1145
        %v1155 = vadd.f32 %v1128, %v1149
        %v1156 = vadd.f32 %v1129, %v1145
        %v1157 = vadd.f32 %v1130, %v1149
        %v1158 = vadd.f32 %v1131, %v1145
        %v1159 = vadd.f32 %v1132, %v1149
        %v1160 = vadd.f32 %v1133, %v1145
        %v1161 = vadd.f32 %v1134, %v1149
        %v1162 = vadd.f32 %v1135, %v1145
        %v1163 = vadd.f32 %v1136, %v1149
        %v1164 = vadd.f32 %v1137, %v1145
        %v1165 = vadd.f32 %v1138, %v1149
        %v1166 = vadd.f32 %v1139, %v1145
        %v1167 = vadd.f32 %v1140, %v1149
        %v1168 = vxor.u32 %v1152, 2147483648
        %v1169 = vxor.u32 %v1153, 2147483648
        %v1170 = vxor.u32 %v1154, 2147483648
        %v1171 = vxor.u32 %v1155, 2147483648
        %v1172 = vxor.u32 %v1156, 2147483648
        %v1173 = vxor.u32 %v1157, 2147483648
        %v1174 = vxor.u32 %v1158, 2147483648
        %v1175 = vxor.u32 %v1159, 2147483648
        %v1176 = vxor.u32 %v1160, 2147483648
        %v1177 = vxor.u32 %v1161, 2147483648
        %v1178 = vxor.u32 %v1162, 2147483648
        %v1179 = vxor.u32 %v1163, 2147483648
        %v1180 = vxor.u32 %v1164, 2147483648
        %v1181 = vxor.u32 %v1165, 2147483648
        %v1182 = vxor.u32 %v1166, 2147483648
        %v1183 = vxor.u32 %v1167, 2147483648
        %v1184 = vmul.f32 %v1168, 1.442695
        %v1185 = vpow.pop %v1184
        %v1186 = vmul.f32 %v1169, 1.442695
        %v1187 = vpow.pop %v1186
        %v1188 = vmul.f32 %v1170, 1.442695
        %v1189 = vpow.pop %v1188
        %v1190 = vmul.f32 %v1171, 1.442695
        %v1191 = vpow.pop %v1190
        %v1192 = vmul.f32 %v1172, 1.442695
        %v1193 = vpow.pop %v1192
        %v1194 = vmul.f32 %v1173, 1.442695
        %v1195 = vpow.pop %v1194
        %v1196 = vmul.f32 %v1174, 1.442695
        %v1197 = vpow.pop %v1196
        %v1198 = vmul.f32 %v1175, 1.442695
        %v1199 = vpow.pop %v1198
        %v1200 = vmul.f32 %v1176, 1.442695
        %v1201 = vpow.pop %v1200
        %v1202 = vmul.f32 %v1177, 1.442695
        %v1203 = vpow.pop %v1202
        %v1204 = vmul.f32 %v1178, 1.442695
        %v1205 = vpow.pop %v1204
        %v1206 = vmul.f32 %v1179, 1.442695
        %v1207 = vpow.pop %v1206
        %v1208 = vmul.f32 %v1180, 1.442695
        %v1209 = vpow.pop %v1208
        %v1210 = vmul.f32 %v1181, 1.442695
        %v1211 = vpow.pop %v1210
        %v1212 = vmul.f32 %v1182, 1.442695
        %v1213 = vpow.pop %v1212
        %v1214 = vmul.f32 %v1183, 1.442695
        %v1215 = vpow.pop %v1214
        %v1216 = vadd.f32 %v1185, 1.0
        %v1217 = vadd.f32 %v1187, 1.0
        %v1218 = vadd.f32 %v1189, 1.0
        %v1219 = vadd.f32 %v1191, 1.0
        %v1220 = vadd.f32 %v1193, 1.0
        %v1221 = vadd.f32 %v1195, 1.0
        %v1222 = vadd.f32 %v1197, 1.0
        %v1223 = vadd.f32 %v1199, 1.0
        %v1224 = vadd.f32 %v1201, 1.0
        %v1225 = vadd.f32 %v1203, 1.0
        %v1226 = vadd.f32 %v1205, 1.0
        %v1227 = vadd.f32 %v1207, 1.0
        %v1228 = vadd.f32 %v1209, 1.0
        %v1229 = vadd.f32 %v1211, 1.0
        %v1230 = vadd.f32 %v1213, 1.0
        %v1231 = vadd.f32 %v1215, 1.0
        %v1232 = vrcp.pop %v1216
        %v1233 = vmul.f32 1.0, %v1232
        %v1234 = vrcp.pop %v1217
        %v1235 = vmul.f32 1.0, %v1234
        %v1236 = vrcp.pop %v1218
        %v1237 = vmul.f32 1.0, %v1236
        %v1238 = vrcp.pop %v1219
        %v1239 = vmul.f32 1.0, %v1238
        %v1240 = vrcp.pop %v1220
        %v1241 = vmul.f32 1.0, %v1240
        %v1242 = vrcp.pop %v1221
        %v1243 = vmul.f32 1.0, %v1242
        %v1244 = vrcp.pop %v1222
        %v1245 = vmul.f32 1.0, %v1244
        %v1246 = vrcp.pop %v1223
        %v1247 = vmul.f32 1.0, %v1246
        %v1248 = vrcp.pop %v1224
        %v1249 = vmul.f32 1.0, %v1248
        %v1250 = vrcp.pop %v1225
        %v1251 = vmul.f32 1.0, %v1250
        %v1252 = vrcp.pop %v1226
        %v1253 = vmul.f32 1.0, %v1252
        %v1254 = vrcp.pop %v1227
        %v1255 = vmul.f32 1.0, %v1254
        %v1256 = vrcp.pop %v1228
        %v1257 = vmul.f32 1.0, %v1256
        %v1258 = vrcp.pop %v1229
        %v1259 = vmul.f32 1.0, %v1258
        %v1260 = vrcp.pop %v1230
        %v1261 = vmul.f32 1.0, %v1260
        %v1262 = vrcp.pop %v1231
        %v1263 = vmul.f32 1.0, %v1262
        %v1264 = vmul.f32 %v1152, %v1233
        %v1265 = vmul.f32 %v1153, %v1235
        %v1266 = vmul.f32 %v1154, %v1237
        %v1267 = vmul.f32 %v1155, %v1239
        %v1268 = vmul.f32 %v1156, %v1241
        %v1269 = vmul.f32 %v1157, %v1243
        %v1270 = vmul.f32 %v1158, %v1245
        %v1271 = vmul.f32 %v1159, %v1247
        %v1272 = vmul.f32 %v1160, %v1249
        %v1273 = vmul.f32 %v1161, %v1251
        %v1274 = vmul.f32 %v1162, %v1253
        %v1275 = vmul.f32 %v1163, %v1255
        %v1276 = vmul.f32 %v1164, %v1257
        %v1277 = vmul.f32 %v1165, %v1259
        %v1278 = vmul.f32 %v1166, %v1261
        %v1279 = vmul.f32 %v1167, %v1263
        %v1280 = vpack.c.bf16 %v1266, %v1264
        %v1281 = vpack.c.bf16 %v1267, %v1265
        %v1282 = vpack.c.bf16 %v1270, %v1268
        %v1283 = vpack.c.bf16 %v1271, %v1269
        %v1284 = vpack.c.bf16 %v1274, %v1272
        %v1285 = vpack.c.bf16 %v1275, %v1273
        %v1286 = vpack.c.bf16 %v1278, %v1276
        %v1287 = vpack.c.bf16 %v1279, %v1277
        %v1288 = vld [vmem:[#allocation8] sm:$0xf]
        %v1289 = vld [vmem:[#allocation8 + $0x4] sm:$0xf]
        %v1290 = vld [vmem:[#allocation8 + $0x8] sm:$0xf]
        %v1291 = vld [vmem:[#allocation8 + $0xc] sm:$0xf]
        %v1292 = vld [vmem:[#allocation8 + $0x10] sm:$0xf]
        %v1293 = vld [vmem:[#allocation8 + $0x14] sm:$0xf]
        %v1294 = vld [vmem:[#allocation8 + $0x18] sm:$0xf]
        %v1295 = vld [vmem:[#allocation8 + $0x1c] sm:$0xf]
        %v1296 = vld [vmem:[#allocation8 + $0x20] sm:$0xf]
        %v1297 = vld [vmem:[#allocation8 + $0x24] sm:$0xf]
        %v1298 = vld [vmem:[#allocation8 + $0x28] sm:$0xf]
        %v1299 = vld [vmem:[#allocation8 + $0x2c] sm:$0xf]
        %v1300 = vld [vmem:[#allocation8 + $0x30] sm:$0xf]
        %v1301 = vld [vmem:[#allocation8 + $0x34] sm:$0xf]
        %v1302 = vld [vmem:[#allocation8 + $0x38] sm:$0xf]
        %v1303 = vld [vmem:[#allocation8 + $0x3c] sm:$0xf]
        %v1304 = vld [vmem:[#allocation8 + $0x40] sm:$0xf]
        %v1305 = vld [vmem:[#allocation8 + $0x44] sm:$0xf]
        %v1306 = vld [vmem:[#allocation8 + $0x48] sm:$0xf]
        %v1307 = vld [vmem:[#allocation8 + $0x4c] sm:$0xf]
        %v1308 = vld [vmem:[#allocation8 + $0x50] sm:$0xf]
        %v1309 = vld [vmem:[#allocation8 + $0x54] sm:$0xf]
        %v1310 = vld [vmem:[#allocation8 + $0x58] sm:$0xf]
        %v1311 = vld [vmem:[#allocation8 + $0x5c] sm:$0xf]
        %v1312 = vld [vmem:[#allocation8 + $0x60] sm:$0xf]
        %v1313 = vld [vmem:[#allocation8 + $0x64] sm:$0xf]
        %v1314 = vld [vmem:[#allocation8 + $0x68] sm:$0xf]
        %v1315 = vld [vmem:[#allocation8 + $0x6c] sm:$0xf]
        %v1316 = vld [vmem:[#allocation8 + $0x70] sm:$0xf]
        %v1317 = vld [vmem:[#allocation8 + $0x74] sm:$0xf]
        %v1318 = vld [vmem:[#allocation8 + $0x78] sm:$0xf]
        %v1319 = vld [vmem:[#allocation8 + $0x7c] sm:$0xf]
        %v1320 = vld [vmem:[%s9] sm:$0x1]
        %v1322 = vlaneseq
        %v1323 = vshrl.u32 %v1322, 7
        %v1324 = vsub.s32 0, %v1323
        %v1325 = vrot.slane %v1320, %v1324
        %v1359 = vunpack.c.l.b16 %v1288
        %v1360 = vunpack.c.l.b16 %v1289
        %v1361 = vunpack.c.l.b16 %v1290
        %v1362 = vunpack.c.l.b16 %v1291
        %v1363 = vunpack.c.l.b16 %v1292
        %v1364 = vunpack.c.l.b16 %v1293
        %v1365 = vunpack.c.l.b16 %v1294
        %v1366 = vunpack.c.l.b16 %v1295
        %v1367 = vunpack.c.l.b16 %v1296
        %v1368 = vunpack.c.l.b16 %v1297
        %v1369 = vunpack.c.l.b16 %v1298
        %v1370 = vunpack.c.l.b16 %v1299
        %v1371 = vunpack.c.l.b16 %v1300
        %v1372 = vunpack.c.l.b16 %v1301
        %v1373 = vunpack.c.l.b16 %v1302
        %v1374 = vunpack.c.l.b16 %v1303
        %v1375 = vunpack.c.l.b16 %v1304
        %v1376 = vunpack.c.l.b16 %v1305
        %v1377 = vunpack.c.l.b16 %v1306
        %v1378 = vunpack.c.l.b16 %v1307
        %v1379 = vunpack.c.l.b16 %v1308
        %v1380 = vunpack.c.l.b16 %v1309
        %v1381 = vunpack.c.l.b16 %v1310
        %v1382 = vunpack.c.l.b16 %v1311
        %v1383 = vunpack.c.l.b16 %v1312
        %v1384 = vunpack.c.l.b16 %v1313
        %v1385 = vunpack.c.l.b16 %v1314
        %v1386 = vunpack.c.l.b16 %v1315
        %v1387 = vunpack.c.l.b16 %v1316
        %v1388 = vunpack.c.l.b16 %v1317
        %v1389 = vunpack.c.l.b16 %v1318
        %v1390 = vunpack.c.l.b16 %v1319
        %v1391 = vpack.c.b16 %v1360, %v1359
        %v1392 = vpack.c.b16 %v1362, %v1361
        %v1393 = vpack.c.b16 %v1364, %v1363
        %v1394 = vpack.c.b16 %v1366, %v1365
        %v1395 = vpack.c.b16 %v1368, %v1367
        %v1396 = vpack.c.b16 %v1370, %v1369
        %v1397 = vpack.c.b16 %v1372, %v1371
        %v1398 = vpack.c.b16 %v1374, %v1373
        %v1399 = vpack.c.b16 %v1376, %v1375
        %v1400 = vpack.c.b16 %v1378, %v1377
        %v1401 = vpack.c.b16 %v1380, %v1379
        %v1402 = vpack.c.b16 %v1382, %v1381
        %v1403 = vpack.c.b16 %v1384, %v1383
        %v1404 = vpack.c.b16 %v1386, %v1385
        %v1405 = vpack.c.b16 %v1388, %v1387
        %v1406 = vpack.c.b16 %v1390, %v1389
        %1423 = vmatprep.subr.bf16.mxu0 0
        %1424 = vmatpush1.bf16.msra.mxu0 %v1391
        %1425 = vmatprep.subr.bf16.mxu0 0
        %1426 = vmatpush1.bf16.msra.mxu0 %v1392
        %1427 = vmatprep.subr.bf16.mxu0 0
        %1428 = vmatpush1.bf16.msra.mxu0 %v1393
        %1429 = vmatprep.subr.bf16.mxu0 0
        %1430 = vmatpush1.bf16.msra.mxu0 %v1394
        %1431 = vmatprep.subr.bf16.mxu0 0
        %1432 = vmatpush1.bf16.msra.mxu0 %v1395
        %1433 = vmatprep.subr.bf16.mxu0 0
        %1434 = vmatpush1.bf16.msra.mxu0 %v1396
        %1435 = vmatprep.subr.bf16.mxu0 0
        %1436 = vmatpush1.bf16.msra.mxu0 %v1397
        %1437 = vmatprep.subr.bf16.mxu0 0
        %1438 = vmatpush1.bf16.msra.mxu0 %v1398
        %1439 = vmatprep.subr.bf16.mxu0 0
        %1440 = vmatpush1.bf16.msra.mxu0 %v1399
        %1441 = vmatprep.subr.bf16.mxu0 0
        %1442 = vmatpush1.bf16.msra.mxu0 %v1400
        %1443 = vmatprep.subr.bf16.mxu0 0
        %1444 = vmatpush1.bf16.msra.mxu0 %v1401
        %1445 = vmatprep.subr.bf16.mxu0 0
        %1446 = vmatpush1.bf16.msra.mxu0 %v1402
        %1447 = vmatprep.subr.bf16.mxu0 0
        %1448 = vmatpush1.bf16.msra.mxu0 %v1403
        %1449 = vmatprep.subr.bf16.mxu0 0
        %1450 = vmatpush1.bf16.msra.mxu0 %v1404
        %1451 = vmatprep.subr.bf16.mxu0 0
        %1452 = vmatpush1.bf16.msra.mxu0 %v1405
        %1453 = vmatprep.subr.bf16.mxu0 0
        %1454 = vmatpush1.bf16.msra.mxu0 %v1406
        %1455 = vmatprep.mubr.bf16.mxu0 %v1281
        %1456 = vmatmul.mubr.bf16.gmra.mrb[0].mxu0 %v1280
        %v1457 = vpop.f32.mrb[0].mxu0
        %v1458 = vadd.f32 %v1325, %v1457
        %v1459 = vpop.f32.mrb[0].mxu0
        %v1460 = vpop.f32.mrb[0].mxu0
        %v1461 = vadd.f32 %v1325, %v1460
        %v1462 = vpop.f32.mrb[0].mxu0
        %1463 = vmatprep.mubr.bf16.mxu0 %v1283
        %1464 = vmatmul.mubr.bf16.gmra.mrb[0].mxu0 %v1282
        %v1465 = vpop.f32.mrb[0].mxu0
        %v1466 = vadd.f32 %v1325, %v1465
        %v1467 = vpop.f32.mrb[0].mxu0
        %v1468 = vpop.f32.mrb[0].mxu0
        %v1469 = vadd.f32 %v1325, %v1468
        %v1470 = vpop.f32.mrb[0].mxu0
        %1471 = vmatprep.mubr.bf16.mxu0 %v1285
        %1472 = vmatmul.mubr.bf16.gmra.mrb[0].mxu0 %v1284
        %v1473 = vpop.f32.mrb[0].mxu0
        %v1474 = vadd.f32 %v1325, %v1473
        %v1475 = vpop.f32.mrb[0].mxu0
        %v1476 = vpop.f32.mrb[0].mxu0
        %v1477 = vadd.f32 %v1325, %v1476
        %v1478 = vpop.f32.mrb[0].mxu0
        %1479 = vmatprep.mubr.bf16.mxu0 %v1287
        %1480 = vmatmul.mubr.bf16.gmra.mrb[0].mxu0 %v1286
        %v1481 = vpop.f32.mrb[0].mxu0
        %v1482 = vadd.f32 %v1325, %v1481
        %v1483 = vpop.f32.mrb[0].mxu0
        %v1484 = vpop.f32.mrb[0].mxu0
        %v1485 = vadd.f32 %v1325, %v1484
        %v1486 = vpop.f32.mrb[0].mxu0
        %1487 = vdwg.mxu0
        %v1488 = vadd.f32 %v451, %v1458
        %v1489 = vadd.f32 %v452, %v1461
        %v1490 = vadd.f32 %v453, %v1466
        %v1491 = vadd.f32 %v454, %v1469
        %v1492 = vadd.f32 %v455, %v1474
        %v1493 = vadd.f32 %v456, %v1477
        %v1494 = vadd.f32 %v457, %v1482
        %v1495 = vadd.f32 %v458, %v1485
        %1496 = vst [vmem:[%s446] sm:$0xff] %v1488
        %1497 = vst [vmem:[%s446 + $0x8] sm:$0xff] %v1489
        %1498 = vst [vmem:[%s446 + $0x10] sm:$0xff] %v1490
        %1499 = vst [vmem:[%s446 + $0x18] sm:$0xff] %v1491
        %1500 = vst [vmem:[%s446 + $0x20] sm:$0xff] %v1492
        %1501 = vst [vmem:[%s446 + $0x28] sm:$0xff] %v1493
        %1502 = vst [vmem:[%s446 + $0x30] sm:$0xff] %v1494
        %1503 = vst [vmem:[%s446 + $0x38] sm:$0xff] %v1495
        %s1504 = sand.u32 %s259, 1
        %s1505 = scalar_lea.sflag [#allocation4], %s1504
        %s1506 = sand.u32 %s259, 1
        %s1507 = smul.addr %s1506, 64
        %s1508 = scalar_lea.vmem [#allocation10], %s1507
        // Predicated region
        $region77: #{tpu_custom_call.1} parent=59 // pred_check
          %p1509 = pneg %p269
        $region78: #{tpu_custom_call.1} parent=59 // pred_check_branch
          %1511 = sbr.rel (%p1509) target = $region80
        $region79: #{tpu_custom_call.1} parent=59 // pred_region
          %s1512 = smul.u32 8, %s31
          %s1514 = ssub.s32 1024, 1024
          %1515 = vsyncadd %s1505, %s1514
          %s1516 = smul.addr %s1512, 128
          %s1517 = scalar_lea.hbm %s10, %s1516
          %s1518 = sshll.u32 %s1508, 4
          %s1519 = int_to_ptr.vmem [resolvable:$true] %s1518
          %1524 = dma.vmem_to_hbm [thread:$0]  %s1519, 1024, %s1517, %s1505, 128, 128, 8
        $region80: #{tpu_custom_call.1} parent=59 // pred_fallthru
          _
      $region60: #{tpu_custom_call.1} parent=5 // pred_fallthru
        _
      %p1525 = scmp.le.s32.totalorder 2, %s26
      // Predicated region
      $region81: #{tpu_custom_call.1} parent=5 // pred_check
        %p1526 = pneg %p1525
      $region82: #{tpu_custom_call.1} parent=5 // pred_check_branch
        %1528 = sbr.rel (%p1526) target = $region84
      $region83: #{tpu_custom_call.1} parent=5 // pred_region
        %s1529 = ssub.s32 %s26, 2
        // Predicated region
        $region85: #{tpu_custom_call.1} parent=83 // pred_check
          %p1530 = pneg %p275
        $region86: #{tpu_custom_call.1} parent=83 // pred_check_branch
          %1532 = sbr.rel (%p1530) target = $region88
        $region87: #{tpu_custom_call.1} parent=83 // pred_region
          %s1533 = sand.u32 %s260, 1
          %s1534 = scalar_lea.sflag [#allocation4], %s1533
          %s1535 = sand.u32 %s260, 1
          %s1536 = smul.addr %s1535, 64
          %s1537 = scalar_lea.vmem [#allocation10], %s1536
          %1538 = dma.done %s1534, 1024
        $region88: #{tpu_custom_call.1} parent=83 // pred_fallthru
          _
      $region84: #{tpu_custom_call.1} parent=5 // pred_fallthru
        _
    $region6: #{tpu_custom_call.1} parent=1 // loop_footer
      %s30 = sadd.s32 1, %s26
    $region7: #{tpu_custom_call.1} parent=1 // loop_footer_branch
      %25 = sbr.rel target = $region3
    $region8: #{tpu_custom_call.1} parent=1 // loop_exit
      _
    %1539 = vsyncpa [#allocation3], 1
    %s1540 = scalar_lea.sflag [#allocation3], 1
    %1541 = vsyncpa %s1540, 1
    %1542 = vsyncpa [#allocation6], 1
    %s1543 = scalar_lea.sflag [#allocation6], 1
    %1544 = vsyncpa %s1543, 1
    %1545 = vsyncpa [#allocation9], 1
    %1546 = vsyncpa [#allocation4], 1
    %s1547 = scalar_lea.sflag [#allocation4], 1
    %1548 = vsyncpa %s1547, 1

</llo_original>
